<compile_context>
chip_gen: v5e
topology: v5e:2x2
jax: 0.10.0
libtpu: 0.0.40
codegen_flags: <defaults>
</compile_context>

<pallas_src>
import math
from functools import partial

import jax
import jax.numpy as jnp
from jax import lax
from jax.experimental import pallas as pl
from jax.experimental.pallas import tpu as pltpu


# ----------------------------------------------------------------------------
# Math helpers (pure jnp; shared by the kernel and the reference)
# ----------------------------------------------------------------------------
def _norm_nogain(x, eps=1e-5):
    """LayerNorm normalization only (gamma/beta folded into the following matmul)."""
    mu = jnp.mean(x, axis=-1, keepdims=True)
    var = jnp.mean(jnp.square(x - mu), axis=-1, keepdims=True)
    return (x - mu) * lax.rsqrt(var + eps)


def _layernorm(x, gamma, beta, eps=1e-5):
    return _norm_nogain(x, eps) * gamma + beta


def _gelu_exact(x):
    # torch.nn.GELU default (erf-based, exact)
    return 0.5 * x * (1.0 + lax.erf(x * (1.0 / math.sqrt(2.0))))


# ----------------------------------------------------------------------------
# Fused decoder kernel: grid = (B, L).  One grid step == one CrossAttnBlockAPI layer
# for one batch element.  The residual stream lives in the (constant-over-l) output
# VMEM block; v (pre-normalized, bf16) is resident per batch element.
# ----------------------------------------------------------------------------
def _decoder_kernel(q_ref, v_ref, vec_ref, bqkv_ref, bfc1_ref,
                    wqkv_ref, wsp_ref, wcq_ref, wck_ref, wcv_ref, wcp_ref,
                    wfc1_ref, wfc2_ref, o_ref, *, num_heads):
    layer = pl.program_id(1)

    @pl.when(layer == 0)
    def _():
        o_ref[...] = q_ref[...]

    _, N, C = o_ref.shape
    M = v_ref.shape[1]
    H = num_heads
    dh = C // H

    vec = vec_ref[0]                                  # (6, C) f32 packed biases
    b_sproj = vec[0:1]
    b_cq = vec[1:2]
    b_ck = vec[2:3]
    b_cv = vec[3:4]
    b_cproj = vec[4:5]
    b_fc2 = vec[5:6]
    b_qkv = bqkv_ref[0]                               # (1, 3C) f32
    b_fc1 = bfc1_ref[0]                               # (1, hid) f32

    # TODO(synk): if o_ref dtype ever becomes bf16, carry the residual in an f32 VMEM
    # scratch instead of round-tripping through o_ref each layer.
    x = o_ref[0].astype(jnp.float32)                  # (N, C) residual stream (f32)
    vhat = v_ref[0]                                   # (M, C) bf16, LNv-normalized

    def mha(qp, kp, vp, wproj_ref, b_proj, m):
        # qp: (N, C) f32 (scale already folded into q); kp/vp: (m, C) f32.
        qh = jnp.stack([qp[:, h * dh:(h + 1) * dh] for h in range(H)], 0).astype(jnp.bfloat16)
        kh = jnp.stack([kp[:, h * dh:(h + 1) * dh] for h in range(H)], 0).astype(jnp.bfloat16)
        vh = jnp.stack([vp[:, h * dh:(h + 1) * dh] for h in range(H)], 0).astype(jnp.bfloat16)
        s = jnp.einsum('hnd,hmd->hnm', qh, kh,
                       preferred_element_type=jnp.float32)             # (H, N, m) f32
        s = s - jnp.max(s, axis=-1, keepdims=True)
        p = jnp.exp(s)
        p = p * pl.reciprocal(jnp.sum(p, axis=-1, keepdims=True), approx=True)
        a = jnp.einsum('hnm,hmd->hnd', p.astype(jnp.bfloat16), vh,
                       preferred_element_type=jnp.float32)              # (H, N, dh) f32
        att = jnp.concatenate([a[h] for h in range(H)], axis=-1)        # (N, C)
        return jnp.dot(att.astype(jnp.bfloat16), wproj_ref[0],
                       preferred_element_type=jnp.float32) + b_proj

    # ---- self-attention:  q = q + Proj(MHA(LN1(q))) -------------------------
    xn = _norm_nogain(x).astype(jnp.bfloat16)
    qkv = jnp.dot(xn, wqkv_ref[0], preferred_element_type=jnp.float32) + b_qkv   # (N,3C)
    x = x + mha(qkv[:, :C], qkv[:, C:2 * C], qkv[:, 2 * C:], wsp_ref, b_sproj, N)

    # ---- cross-attention: q = q + Proj(MHA(LNq(q), LNv(v))) -----------------
    xq = _norm_nogain(x).astype(jnp.bfloat16)
    qp = jnp.dot(xq, wcq_ref[0], preferred_element_type=jnp.float32) + b_cq      # (N,C)
    kp = jnp.dot(vhat, wck_ref[0], preferred_element_type=jnp.float32) + b_ck    # (M,C)
    vp = jnp.dot(vhat, wcv_ref[0], preferred_element_type=jnp.float32) + b_cv    # (M,C)
    x = x + mha(qp, kp, vp, wcp_ref, b_cproj, M)

    # ---- MLP:            q = q + FC2(GELU(FC1(LN2(q)))) ---------------------
    x2 = _norm_nogain(x).astype(jnp.bfloat16)
    h = jnp.dot(x2, wfc1_ref[0], preferred_element_type=jnp.float32) + b_fc1
    h = _gelu_exact(h).astype(jnp.bfloat16)
    x = x + jnp.dot(h, wfc2_ref[0], preferred_element_type=jnp.float32) + b_fc2

    o_ref[...] = x.reshape(1, N, C).astype(o_ref.dtype)


# ----------------------------------------------------------------------------
# Weight packing: fold attention scale + all LayerNorm affines into the following
# weight matrices (f32 math), then store the stacked weights in bf16.
# ----------------------------------------------------------------------------
def build_decoder_weights(params_list, num_heads, weight_dtype=jnp.bfloat16):
    C = params_list[0]["w_qkv"].shape[0]
    scale = (C // num_heads) ** -0.5

    wq, wsp, wcq, wck, wcv, wcp, wf1, wf2 = [], [], [], [], [], [], [], []
    vecs, bqkv, bfc1 = [], [], []
    for p in params_list:
        g1, b1 = p["ln1_g"].reshape(C, 1), p["ln1_b"]
        gq, bq = p["lnq_g"].reshape(C, 1), p["lnq_b"]
        gv, bv = p["lnv_g"].reshape(C, 1), p["lnv_b"]
        g2, b2 = p["ln2_g"].reshape(C, 1), p["ln2_b"]

        w_qkv_s = p["w_qkv"].at[:, :C].multiply(scale)     # scale folded into q cols
        wq.append(g1 * w_qkv_s)                            # ln1 gamma folded
        b_qkv = b1 @ w_qkv_s                               # ln1 beta folded -> bias (1,3C)

        w_cq_s = p["w_cq"] * scale                         # scale folded into cross-q
        wcq.append(gq * w_cq_s)
        b_cq = bq @ w_cq_s

        wck.append(gv * p["w_ck"]); b_ck = bv @ p["w_ck"]  # lnv affine folded
        wcv.append(gv * p["w_cv"]); b_cv = bv @ p["w_cv"]

        wf1.append(g2 * p["w_fc1"])                        # ln2 affine folded
        b_fc1 = p["b_fc1"] + b2 @ p["w_fc1"]

        wsp.append(p["w_sproj"]); wcp.append(p["w_cproj"]); wf2.append(p["w_fc2"])

        vecs.append(jnp.concatenate(
            [p["b_sproj"], b_cq, b_ck, b_cv, p["b_cproj"], p["b_fc2"]], axis=0))  # (6,C)
        bqkv.append(b_qkv)
        bfc1.append(b_fc1)

    st = lambda xs: jnp.stack(xs, axis=0)
    wd = lambda xs: st(xs).astype(weight_dtype)
    return {
        "vecs_c": st(vecs).astype(jnp.float32),            # (L, 6, C)
        "b_qkv": st(bqkv).astype(jnp.float32),              # (L, 1, 3C)
        "b_fc1": st(bfc1).astype(jnp.float32),               # (L, 1, hid)
        "w_qkv": wd(wq), "w_sproj": wd(wsp),
        "w_cq": wd(wcq), "w_ck": wd(wck), "w_cv": wd(wcv), "w_cproj": wd(wcp),
        "w_fc1": wd(wf1), "w_fc2": wd(wf2),
    }


# ----------------------------------------------------------------------------
# Fused decoder pallas_call (single kernel for the whole depth loop), under jit
# ----------------------------------------------------------------------------
@partial(jax.jit, static_argnames=("num_heads",))
def transformer_decoder_fused(q, v, stacked, *, num_heads):
    B, N, C = q.shape
    M = v.shape[1]
    L = stacked["w_qkv"].shape[0]
    hid = stacked["w_fc1"].shape[-1]

    # LNv normalization of the layer-invariant v hoisted out of the layer loop; the
    # per-layer lnv gamma/beta are folded into w_ck/w_cv (+ biases) at prep time.
    vhat = _norm_nogain(v.astype(jnp.float32)).astype(jnp.bfloat16)

    def lw(arr):   # per-layer weight block, indexed by the layer grid axis
        nd = arr.ndim
        return pl.BlockSpec((1,) + arr.shape[1:],
                            lambda b, l, _nd=nd: (l,) + (0,) * (_nd - 1))

    def per_batch(shape):   # per-batch-element block, resident across the layer axis
        return pl.BlockSpec(shape, lambda b, l: (b,) + (0,) * (len(shape) - 1))

    # VMEM budget: double-buffered per-layer weights + resident q/v/out + temporaries.
    wkeys = ("vecs_c", "b_qkv", "b_fc1", "w_qkv", "w_sproj", "w_cq", "w_ck", "w_cv",
             "w_cproj", "w_fc1", "w_fc2")
    per_layer_bytes = sum(stacked[k].size * stacked[k].dtype.itemsize for k in wkeys) // L
    act_bytes = 4 * (8 * N * C + 4 * M * C + 4 * num_heads * N * max(N, M) + 2 * N * hid)
    est = 2 * per_layer_bytes + act_bytes + 3 * 4 * N * C + 2 * 2 * M * C + (4 << 20)
    vmem_limit = int(min(max(est, 32 << 20), 100 << 20))

    return pl.pallas_call(
        partial(_decoder_kernel, num_heads=num_heads),
        out_shape=jax.ShapeDtypeStruct((B, N, C), q.dtype),
        grid=(B, L),
        in_specs=[
            per_batch((1, N, C)),                # q (read at layer 0 only)
            per_batch((1, M, C)),                # vhat (bf16, resident across layers)
            lw(stacked["vecs_c"]), lw(stacked["b_qkv"]), lw(stacked["b_fc1"]),
            lw(stacked["w_qkv"]), lw(stacked["w_sproj"]),
            lw(stacked["w_cq"]), lw(stacked["w_ck"]), lw(stacked["w_cv"]),
            lw(stacked["w_cproj"]),
            lw(stacked["w_fc1"]), lw(stacked["w_fc2"]),
        ],
        out_specs=per_batch((1, N, C)),
        compiler_params=pltpu.CompilerParams(
            dimension_semantics=("parallel", "arbitrary"),
            vmem_limit_bytes=vmem_limit,
        ),
    )(q, vhat, stacked["vecs_c"], stacked["b_qkv"], stacked["b_fc1"],
      stacked["w_qkv"], stacked["w_sproj"],
      stacked["w_cq"], stacked["w_ck"], stacked["w_cv"], stacked["w_cproj"],
      stacked["w_fc1"], stacked["w_fc2"])


def transformer_decoder(q, v, q_pos, v_pos, params_list, num_heads, k,
                        denoise_length=None):
    """Mirrors TransformerDecoder.forward for the 'attn'/'attn' configuration.

    knn_point(self.k, ...) indices are never consumed by plain-'attn' blocks, so the
    eager pairwise-distance + argsort (dead work) is skipped entirely.
    """
    if denoise_length is not None:
        # TODO(synk): denoise_length attention masking not implemented.
        raise NotImplementedError("denoise_length masking not implemented")
    del q_pos, v_pos, k
    stacked = build_decoder_weights(params_list, num_heads)
    return transformer_decoder_fused(q, v, stacked, num_heads=num_heads)


# ----------------------------------------------------------------------------
# Deterministic parameter init (synthetic; shapes follow the nn.Module __init__).
# LN gammas/betas get small noise so the affine-folding path is actually exercised.
# ----------------------------------------------------------------------------
def init_block_params(key, dim, mlp_ratio):
    hid = int(dim * mlp_ratio)
    ks = jax.random.split(key, 18)
    n = lambda kk, shape, s=0.02: (s * jax.random.normal(kk, shape)).astype(jnp.float32)
    g = lambda kk, shape: (1.0 + 0.1 * jax.random.normal(kk, shape)).astype(jnp.float32)
    b = lambda kk, shape: (0.1 * jax.random.normal(kk, shape)).astype(jnp.float32)
    return {
        # self-attn (Attention: qkv bias=False, proj bias=True)
        "ln1_g": g(ks[10], (1, dim)), "ln1_b": b(ks[11], (1, dim)),
        "w_qkv": n(ks[0], (dim, 3 * dim)),
        "w_sproj": n(ks[1], (dim, dim)), "b_sproj": n(ks[2], (1, dim)),
        # cross-attn (CrossAttention: q/k/v bias=False, proj bias=True)
        "lnq_g": g(ks[12], (1, dim)), "lnq_b": b(ks[13], (1, dim)),
        "lnv_g": g(ks[14], (1, dim)), "lnv_b": b(ks[15], (1, dim)),
        "w_cq": n(ks[3], (dim, dim)), "w_ck": n(ks[4], (dim, dim)), "w_cv": n(ks[5], (dim, dim)),
        "w_cproj": n(ks[6], (dim, dim)), "b_cproj": n(ks[7], (1, dim)),
        # MLP
        "ln2_g": g(ks[16], (1, dim)), "ln2_b": b(ks[17], (1, dim)),
        "w_fc1": n(ks[8], (dim, hid)), "b_fc1": jnp.zeros((1, hid), jnp.float32),
        "w_fc2": n(ks[9], (hid, dim)), "b_fc2": jnp.zeros((1, dim), jnp.float32),
    }


# ----------------------------------------------------------------------------
# Pure-JAX f32 reference (same math as the PyTorch module) for a correctness check
# ----------------------------------------------------------------------------
def _ref_mha(qp, kp, vp, num_heads, scale):
    N, C = qp.shape
    dh = C // num_heads
    outs = []
    for h in range(num_heads):
        qh = qp[:, h * dh:(h + 1) * dh]
        kh = kp[:, h * dh:(h + 1) * dh]
        vh = vp[:, h * dh:(h + 1) * dh]
        s = (qh @ kh.T) * scale
        s = s - jnp.max(s, axis=-1, keepdims=True)
        p = jnp.exp(s)
        p = p / jnp.sum(p, axis=-1, keepdims=True)
        outs.append(p @ vh)
    return jnp.concatenate(outs, axis=-1)


def _ref_block_one(x, y, p, num_heads):
    C = x.shape[-1]
    scale = (C // num_heads) ** -0.5
    xn = _layernorm(x, p["ln1_g"], p["ln1_b"])
    qkv = xn @ p["w_qkv"]
    f = _ref_mha(qkv[:, :C], qkv[:, C:2 * C], qkv[:, 2 * C:], num_heads, scale)
    x = x + f @ p["w_sproj"] + p["b_sproj"]
    xq = _layernorm(x, p["lnq_g"], p["lnq_b"])
    yv = _layernorm(y, p["lnv_g"], p["lnv_b"])
    f = _ref_mha(xq @ p["w_cq"], yv @ p["w_ck"], yv @ p["w_cv"], num_heads, scale)
    x = x + f @ p["w_cproj"] + p["b_cproj"]
    x2 = _layernorm(x, p["ln2_g"], p["ln2_b"])
    h = _gelu_exact(x2 @ p["w_fc1"] + p["b_fc1"])
    return x + h @ p["w_fc2"] + p["b_fc2"]


def ref_decoder(q, v, params_list, num_heads):
    for p in params_list:
        q = jax.vmap(_ref_block_one, in_axes=(0, 0, None, None))(q, v, p, num_heads)
    return q


# ----------------------------------------------------------------------------
if __name__ == "__main__":
    B, Nq, Nv, C = 2, 16, 32, 64
    num_heads, depth, mlp_ratio, k = 4, 2, 4.0, 6

    key = jax.random.PRNGKey(0)
    keys = jax.random.split(key, 4 + depth)
    q = jax.random.normal(keys[0], (B, Nq, C), jnp.float32)
    v = jax.random.normal(keys[1], (B, Nv, C), jnp.float32)
    q_pos = jax.random.normal(keys[2], (B, Nq, 3), jnp.float32)
    v_pos = jax.random.normal(keys[3], (B, Nv, 3), jnp.float32)
    params = [init_block_params(keys[4 + i], C, mlp_ratio) for i in range(depth)]

    out = transformer_decoder(q, v, q_pos, v_pos, params, num_heads, k)
    out = jax.block_until_ready(out)

    ref = ref_decoder(q, v, params, num_heads)
    err = float(jnp.max(jnp.abs(out - ref)))
    assert out.shape == (B, Nq, C)
    # Tolerance accounts for intentional bf16 matmul operands + approx reciprocal.
    if err > 1e-2:
        raise SystemExit(f"mismatch vs reference: max abs err = {err}")
    print("KERNEL_OK")
</pallas_src>

<mosaic_0001>
module attributes {stable_mosaic.version = 11 : i64} {
  func.func @_decoder_kernel(%arg0: i32, %arg1: i32, %arg2: memref<1x16x64xf32, #tpu.memory_space<vmem>>, %arg3: memref<1x32x64xbf16, #tpu.memory_space<vmem>>, %arg4: memref<1x6x64xf32, #tpu.memory_space<vmem>>, %arg5: memref<1x1x192xf32, #tpu.memory_space<vmem>>, %arg6: memref<1x1x256xf32, #tpu.memory_space<vmem>>, %arg7: memref<1x64x192xbf16, #tpu.memory_space<vmem>>, %arg8: memref<1x64x64xbf16, #tpu.memory_space<vmem>>, %arg9: memref<1x64x64xbf16, #tpu.memory_space<vmem>>, %arg10: memref<1x64x64xbf16, #tpu.memory_space<vmem>>, %arg11: memref<1x64x64xbf16, #tpu.memory_space<vmem>>, %arg12: memref<1x64x64xbf16, #tpu.memory_space<vmem>>, %arg13: memref<1x64x256xbf16, #tpu.memory_space<vmem>>, %arg14: memref<1x256x64xbf16, #tpu.memory_space<vmem>>, %arg15: memref<1x16x64xf32, #tpu.memory_space<vmem>>) attributes {dimension_semantics = [#tpu.dimension_semantics<parallel>, #tpu.dimension_semantics<arbitrary>], iteration_bounds = array<i64: 2, 2>, scalar_prefetch = 0 : i64, scratch_operands = 0 : i64, tpu.core_type = #tpu.core_type<tc>, window_params = [{transform_indices = @transform_0, window_bounds = array<i64: 1, 16, 64>}, {transform_indices = @transform_1, window_bounds = array<i64: 1, 32, 64>}, {transform_indices = @transform_2, window_bounds = array<i64: 1, 6, 64>}, {transform_indices = @transform_3, window_bounds = array<i64: 1, 1, 192>}, {transform_indices = @transform_4, window_bounds = array<i64: 1, 1, 256>}, {transform_indices = @transform_5, window_bounds = array<i64: 1, 64, 192>}, {transform_indices = @transform_6, window_bounds = array<i64: 1, 64, 64>}, {transform_indices = @transform_7, window_bounds = array<i64: 1, 64, 64>}, {transform_indices = @transform_8, window_bounds = array<i64: 1, 64, 64>}, {transform_indices = @transform_9, window_bounds = array<i64: 1, 64, 64>}, {transform_indices = @transform_10, window_bounds = array<i64: 1, 64, 64>}, {transform_indices = @transform_11, window_bounds = array<i64: 1, 64, 256>}, {transform_indices = @transform_12, window_bounds = array<i64: 1, 256, 64>}, {transform_indices = @transform_13, window_bounds = array<i64: 1, 16, 64>}]} {
    %c0_i32 = arith.constant 0 : i32
    %0 = arith.cmpi eq, %arg1, %c0_i32 : i32
    %1 = arith.extui %0 : i1 to i32
    %c0_i32_0 = arith.constant 0 : i32
    %2 = arith.cmpi ne, %1, %c0_i32_0 : i32
    scf.if %2 {
      %c0_75 = arith.constant 0 : index
      %c0_76 = arith.constant 0 : index
      %c0_77 = arith.constant 0 : index
      %239 = vector.load %arg2[%c0_75, %c0_76, %c0_77] : memref<1x16x64xf32, #tpu.memory_space<vmem>>, vector<1x16x64xf32>
      %c0_78 = arith.constant 0 : index
      %c0_79 = arith.constant 0 : index
      %c0_80 = arith.constant 0 : index
      %240 = vector.load %arg15[%c0_78, %c0_79, %c0_80] : memref<1x16x64xf32, #tpu.memory_space<vmem>>, vector<1x16x64xf32>
      tpu.vector_store %arg15[%c0_78, %c0_79, %c0_80], %239 {strides = array<i32>} : memref<1x16x64xf32, #tpu.memory_space<vmem>>, vector<1x16x64xf32>,
    } else {
    }
    %c0 = arith.constant 0 : index
    %c0_1 = arith.constant 0 : index
    %c0_2 = arith.constant 0 : index
    %3 = vector.load %arg4[%c0, %c0_1, %c0_2] : memref<1x6x64xf32, #tpu.memory_space<vmem>>, vector<1x6x64xf32>
    %4 = vector.shape_cast %3 : vector<1x6x64xf32> to vector<6x64xf32>
    %5 = vector.extract_strided_slice %4 {offsets = [0, 0], sizes = [1, 64], strides = [1, 1]} : vector<6x64xf32> to vector<1x64xf32>
    %6 = vector.extract_strided_slice %4 {offsets = [1, 0], sizes = [1, 64], strides = [1, 1]} : vector<6x64xf32> to vector<1x64xf32>
    %7 = vector.extract_strided_slice %4 {offsets = [2, 0], sizes = [1, 64], strides = [1, 1]} : vector<6x64xf32> to vector<1x64xf32>
    %8 = vector.extract_strided_slice %4 {offsets = [3, 0], sizes = [1, 64], strides = [1, 1]} : vector<6x64xf32> to vector<1x64xf32>
    %9 = vector.extract_strided_slice %4 {offsets = [4, 0], sizes = [1, 64], strides = [1, 1]} : vector<6x64xf32> to vector<1x64xf32>
    %10 = vector.extract_strided_slice %4 {offsets = [5, 0], sizes = [1, 64], strides = [1, 1]} : vector<6x64xf32> to vector<1x64xf32>
    %c0_3 = arith.constant 0 : index
    %c0_4 = arith.constant 0 : index
    %c0_5 = arith.constant 0 : index
    %11 = vector.load %arg5[%c0_3, %c0_4, %c0_5] : memref<1x1x192xf32, #tpu.memory_space<vmem>>, vector<1x1x192xf32>
    %12 = vector.shape_cast %11 : vector<1x1x192xf32> to vector<1x192xf32>
    %c0_6 = arith.constant 0 : index
    %c0_7 = arith.constant 0 : index
    %c0_8 = arith.constant 0 : index
    %13 = vector.load %arg6[%c0_6, %c0_7, %c0_8] : memref<1x1x256xf32, #tpu.memory_space<vmem>>, vector<1x1x256xf32>
    %14 = vector.shape_cast %13 : vector<1x1x256xf32> to vector<1x256xf32>
    %c0_9 = arith.constant 0 : index
    %c0_10 = arith.constant 0 : index
    %c0_11 = arith.constant 0 : index
    %15 = vector.load %arg15[%c0_9, %c0_10, %c0_11] : memref<1x16x64xf32, #tpu.memory_space<vmem>>, vector<1x16x64xf32>
    %16 = vector.shape_cast %15 : vector<1x16x64xf32> to vector<16x64xf32>
    %c0_12 = arith.constant 0 : index
    %c0_13 = arith.constant 0 : index
    %c0_14 = arith.constant 0 : index
    %17 = vector.load %arg3[%c0_12, %c0_13, %c0_14] : memref<1x32x64xbf16, #tpu.memory_space<vmem>>, vector<1x32x64xbf16>
    %18 = vector.shape_cast %17 : vector<1x32x64xbf16> to vector<32x64xbf16>
    %cst = arith.constant dense<0.000000e+00> : vector<16xf32>
    %19 = vector.multi_reduction <add>, %16, %cst [1] : vector<16x64xf32> to vector<16xf32>
    %20 = vector.shape_cast %19 : vector<16xf32> to vector<16x1xf32>
    %cst_15 = arith.constant 6.400000e+01 : f32
    %21 = vector.broadcast %cst_15 : f32 to vector<16x1xf32>
    %22 = arith.divf %20, %21 : vector<16x1xf32>
    %23 = vector.broadcast %22 : vector<16x1xf32> to vector<16x64xf32>
    %24 = arith.subf %16, %23 : vector<16x64xf32>
    %25 = arith.mulf %24, %24 : vector<16x64xf32>
    %cst_16 = arith.constant dense<0.000000e+00> : vector<16xf32>
    %26 = vector.multi_reduction <add>, %25, %cst_16 [1] : vector<16x64xf32> to vector<16xf32>
    %27 = vector.shape_cast %26 : vector<16xf32> to vector<16x1xf32>
    %cst_17 = arith.constant 6.400000e+01 : f32
    %28 = vector.broadcast %cst_17 : f32 to vector<16x1xf32>
    %29 = arith.divf %27, %28 : vector<16x1xf32>
    %30 = vector.broadcast %22 : vector<16x1xf32> to vector<16x64xf32>
    %31 = arith.subf %16, %30 : vector<16x64xf32>
    %cst_18 = arith.constant 9.99999974E-6 : f32
    %32 = vector.broadcast %cst_18 : f32 to vector<16x1xf32>
    %33 = arith.addf %29, %32 : vector<16x1xf32>
    %34 = math.rsqrt %33 : vector<16x1xf32>
    %35 = vector.broadcast %34 : vector<16x1xf32> to vector<16x64xf32>
    %36 = arith.mulf %31, %35 : vector<16x64xf32>
    %37 = arith.truncf %36 : vector<16x64xf32> to vector<16x64xbf16>
    %c0_19 = arith.constant 0 : index
    %c0_20 = arith.constant 0 : index
    %c0_21 = arith.constant 0 : index
    %38 = vector.load %arg7[%c0_19, %c0_20, %c0_21] : memref<1x64x192xbf16, #tpu.memory_space<vmem>>, vector<1x64x192xbf16>
    %39 = vector.shape_cast %38 : vector<1x64x192xbf16> to vector<64x192xbf16>
    %cst_22 = arith.constant dense<0.000000e+00> : vector<16x192xf32>
    %40 = tpu.matmul %37, %39, %cst_22 {dimension_numbers = #tpu.dot_dimension_numbers<[1], [0], [0], [1], [0, 0, 1, 1], [], []>} : vector<16x64xbf16>, vector<64x192xbf16>, vector<16x192xf32> -> vector<16x192xf32>
    %41 = vector.broadcast %12 : vector<1x192xf32> to vector<16x192xf32>
    %42 = arith.addf %40, %41 : vector<16x192xf32>
    %43 = vector.extract_strided_slice %42 {offsets = [0, 0], sizes = [16, 64], strides = [1, 1]} : vector<16x192xf32> to vector<16x64xf32>
    %44 = vector.extract_strided_slice %42 {offsets = [0, 64], sizes = [16, 64], strides = [1, 1]} : vector<16x192xf32> to vector<16x64xf32>
    %45 = vector.extract_strided_slice %42 {offsets = [0, 128], sizes = [16, 64], strides = [1, 1]} : vector<16x192xf32> to vector<16x64xf32>
    %46 = vector.extract_strided_slice %43 {offsets = [0, 0], sizes = [16, 16], strides = [1, 1]} : vector<16x64xf32> to vector<16x16xf32>
    %47 = vector.extract_strided_slice %43 {offsets = [0, 16], sizes = [16, 16], strides = [1, 1]} : vector<16x64xf32> to vector<16x16xf32>
    %48 = vector.extract_strided_slice %43 {offsets = [0, 32], sizes = [16, 16], strides = [1, 1]} : vector<16x64xf32> to vector<16x16xf32>
    %49 = vector.extract_strided_slice %43 {offsets = [0, 48], sizes = [16, 16], strides = [1, 1]} : vector<16x64xf32> to vector<16x16xf32>
    %50 = vector.shape_cast %46 : vector<16x16xf32> to vector<1x16x16xf32>
    %51 = vector.shape_cast %47 : vector<16x16xf32> to vector<1x16x16xf32>
    %52 = vector.shape_cast %48 : vector<16x16xf32> to vector<1x16x16xf32>
    %53 = vector.shape_cast %49 : vector<16x16xf32> to vector<1x16x16xf32>
    %54 = tpu.concatenate %50, %51, %52, %53 in 0 : vector<1x16x16xf32>, vector<1x16x16xf32>, vector<1x16x16xf32>, vector<1x16x16xf32> -> vector<4x16x16xf32>
    %55 = arith.truncf %54 : vector<4x16x16xf32> to vector<4x16x16xbf16>
    %56 = vector.extract_strided_slice %44 {offsets = [0, 0], sizes = [16, 16], strides = [1, 1]} : vector<16x64xf32> to vector<16x16xf32>
    %57 = vector.extract_strided_slice %44 {offsets = [0, 16], sizes = [16, 16], strides = [1, 1]} : vector<16x64xf32> to vector<16x16xf32>
    %58 = vector.extract_strided_slice %44 {offsets = [0, 32], sizes = [16, 16], strides = [1, 1]} : vector<16x64xf32> to vector<16x16xf32>
    %59 = vector.extract_strided_slice %44 {offsets = [0, 48], sizes = [16, 16], strides = [1, 1]} : vector<16x64xf32> to vector<16x16xf32>
    %60 = vector.shape_cast %56 : vector<16x16xf32> to vector<1x16x16xf32>
    %61 = vector.shape_cast %57 : vector<16x16xf32> to vector<1x16x16xf32>
    %62 = vector.shape_cast %58 : vector<16x16xf32> to vector<1x16x16xf32>
    %63 = vector.shape_cast %59 : vector<16x16xf32> to vector<1x16x16xf32>
    %64 = tpu.concatenate %60, %61, %62, %63 in 0 : vector<1x16x16xf32>, vector<1x16x16xf32>, vector<1x16x16xf32>, vector<1x16x16xf32> -> vector<4x16x16xf32>
    %65 = arith.truncf %64 : vector<4x16x16xf32> to vector<4x16x16xbf16>
    %66 = vector.extract_strided_slice %45 {offsets = [0, 0], sizes = [16, 16], strides = [1, 1]} : vector<16x64xf32> to vector<16x16xf32>
    %67 = vector.extract_strided_slice %45 {offsets = [0, 16], sizes = [16, 16], strides = [1, 1]} : vector<16x64xf32> to vector<16x16xf32>
    %68 = vector.extract_strided_slice %45 {offsets = [0, 32], sizes = [16, 16], strides = [1, 1]} : vector<16x64xf32> to vector<16x16xf32>
    %69 = vector.extract_strided_slice %45 {offsets = [0, 48], sizes = [16, 16], strides = [1, 1]} : vector<16x64xf32> to vector<16x16xf32>
    %70 = vector.shape_cast %66 : vector<16x16xf32> to vector<1x16x16xf32>
    %71 = vector.shape_cast %67 : vector<16x16xf32> to vector<1x16x16xf32>
    %72 = vector.shape_cast %68 : vector<16x16xf32> to vector<1x16x16xf32>
    %73 = vector.shape_cast %69 : vector<16x16xf32> to vector<1x16x16xf32>
    %74 = tpu.concatenate %70, %71, %72, %73 in 0 : vector<1x16x16xf32>, vector<1x16x16xf32>, vector<1x16x16xf32>, vector<1x16x16xf32> -> vector<4x16x16xf32>
    %75 = arith.truncf %74 : vector<4x16x16xf32> to vector<4x16x16xbf16>
    "tpu.trace_start"() <{level = 10 : i32, message = "hnd,hmd->hnm"}> : () -> ()
    %cst_23 = arith.constant dense<0.000000e+00> : vector<4x16x16xf32>
    %76 = tpu.matmul %55, %65, %cst_23 {dimension_numbers = #tpu.dot_dimension_numbers<[2], [2], [1], [1], [0, 0, 0, 1, 1, 1], [0], [0]>} : vector<4x16x16xbf16>, vector<4x16x16xbf16>, vector<4x16x16xf32> -> vector<4x16x16xf32>
    "tpu.trace_stop"() : () -> ()
    %cst_24 = arith.constant dense<0xFF800000> : vector<4x16xf32>
    %77 = vector.multi_reduction <maximumf>, %76, %cst_24 [2] : vector<4x16x16xf32> to vector<4x16xf32>
    %78 = vector.shape_cast %77 : vector<4x16xf32> to vector<4x16x1xf32>
    %79 = vector.broadcast %78 : vector<4x16x1xf32> to vector<4x16x16xf32>
    %80 = arith.subf %76, %79 : vector<4x16x16xf32>
    %81 = math.exp %80 : vector<4x16x16xf32>
    %cst_25 = arith.constant dense<0.000000e+00> : vector<4x16xf32>
    %82 = vector.multi_reduction <add>, %81, %cst_25 [2] : vector<4x16x16xf32> to vector<4x16xf32>
    %83 = vector.shape_cast %82 : vector<4x16xf32> to vector<4x16x1xf32>
    %84 = tpu.reciprocal %83 {approx = true} : vector<4x16x1xf32> -> vector<4x16x1xf32>
    %85 = vector.broadcast %84 : vector<4x16x1xf32> to vector<4x16x16xf32>
    %86 = arith.mulf %81, %85 : vector<4x16x16xf32>
    %87 = arith.truncf %86 : vector<4x16x16xf32> to vector<4x16x16xbf16>
    "tpu.trace_start"() <{level = 10 : i32, message = "hnm,hmd->hnd"}> : () -> ()
    %cst_26 = arith.constant dense<0.000000e+00> : vector<4x16x16xf32>
    %88 = tpu.matmul %87, %75, %cst_26 {dimension_numbers = #tpu.dot_dimension_numbers<[2], [1], [1], [2], [0, 0, 0, 1, 1, 2], [0], [0]>} : vector<4x16x16xbf16>, vector<4x16x16xbf16>, vector<4x16x16xf32> -> vector<4x16x16xf32>
    "tpu.trace_stop"() : () -> ()
    %89 = vector.extract_strided_slice %88 {offsets = [0, 0, 0], sizes = [1, 16, 16], strides = [1, 1, 1]} : vector<4x16x16xf32> to vector<1x16x16xf32>
    %90 = vector.shape_cast %89 : vector<1x16x16xf32> to vector<16x16xf32>
    %91 = vector.extract_strided_slice %88 {offsets = [1, 0, 0], sizes = [1, 16, 16], strides = [1, 1, 1]} : vector<4x16x16xf32> to vector<1x16x16xf32>
    %92 = vector.shape_cast %91 : vector<1x16x16xf32> to vector<16x16xf32>
    %93 = vector.extract_strided_slice %88 {offsets = [2, 0, 0], sizes = [1, 16, 16], strides = [1, 1, 1]} : vector<4x16x16xf32> to vector<1x16x16xf32>
    %94 = vector.shape_cast %93 : vector<1x16x16xf32> to vector<16x16xf32>
    %95 = vector.extract_strided_slice %88 {offsets = [3, 0, 0], sizes = [1, 16, 16], strides = [1, 1, 1]} : vector<4x16x16xf32> to vector<1x16x16xf32>
    %96 = vector.shape_cast %95 : vector<1x16x16xf32> to vector<16x16xf32>
    %97 = tpu.concatenate %90, %92, %94, %96 in 1 : vector<16x16xf32>, vector<16x16xf32>, vector<16x16xf32>, vector<16x16xf32> -> vector<16x64xf32>
    %98 = arith.truncf %97 : vector<16x64xf32> to vector<16x64xbf16>
    %c0_27 = arith.constant 0 : index
    %c0_28 = arith.constant 0 : index
    %c0_29 = arith.constant 0 : index
    %99 = vector.load %arg8[%c0_27, %c0_28, %c0_29] : memref<1x64x64xbf16, #tpu.memory_space<vmem>>, vector<1x64x64xbf16>
    %100 = vector.shape_cast %99 : vector<1x64x64xbf16> to vector<64x64xbf16>
    %cst_30 = arith.constant dense<0.000000e+00> : vector<16x64xf32>
    %101 = tpu.matmul %98, %100, %cst_30 {dimension_numbers = #tpu.dot_dimension_numbers<[1], [0], [0], [1], [0, 0, 1, 1], [], []>} : vector<16x64xbf16>, vector<64x64xbf16>, vector<16x64xf32> -> vector<16x64xf32>
    %102 = vector.broadcast %5 : vector<1x64xf32> to vector<16x64xf32>
    %103 = arith.addf %101, %102 : vector<16x64xf32>
    %104 = arith.addf %16, %103 : vector<16x64xf32>
    %cst_31 = arith.constant dense<0.000000e+00> : vector<16xf32>
    %105 = vector.multi_reduction <add>, %104, %cst_31 [1] : vector<16x64xf32> to vector<16xf32>
    %106 = vector.shape_cast %105 : vector<16xf32> to vector<16x1xf32>
    %cst_32 = arith.constant 6.400000e+01 : f32
    %107 = vector.broadcast %cst_32 : f32 to vector<16x1xf32>
    %108 = arith.divf %106, %107 : vector<16x1xf32>
    %109 = vector.broadcast %108 : vector<16x1xf32> to vector<16x64xf32>
    %110 = arith.subf %104, %109 : vector<16x64xf32>
    %111 = arith.mulf %110, %110 : vector<16x64xf32>
    %cst_33 = arith.constant dense<0.000000e+00> : vector<16xf32>
    %112 = vector.multi_reduction <add>, %111, %cst_33 [1] : vector<16x64xf32> to vector<16xf32>
    %113 = vector.shape_cast %112 : vector<16xf32> to vector<16x1xf32>
    %cst_34 = arith.constant 6.400000e+01 : f32
    %114 = vector.broadcast %cst_34 : f32 to vector<16x1xf32>
    %115 = arith.divf %113, %114 : vector<16x1xf32>
    %116 = vector.broadcast %108 : vector<16x1xf32> to vector<16x64xf32>
    %117 = arith.subf %104, %116 : vector<16x64xf32>
    %cst_35 = arith.constant 9.99999974E-6 : f32
    %118 = vector.broadcast %cst_35 : f32 to vector<16x1xf32>
    %119 = arith.addf %115, %118 : vector<16x1xf32>
    %120 = math.rsqrt %119 : vector<16x1xf32>
    %121 = vector.broadcast %120 : vector<16x1xf32> to vector<16x64xf32>
    %122 = arith.mulf %117, %121 : vector<16x64xf32>
    %123 = arith.truncf %122 : vector<16x64xf32> to vector<16x64xbf16>
    %c0_36 = arith.constant 0 : index
    %c0_37 = arith.constant 0 : index
    %c0_38 = arith.constant 0 : index
    %124 = vector.load %arg9[%c0_36, %c0_37, %c0_38] : memref<1x64x64xbf16, #tpu.memory_space<vmem>>, vector<1x64x64xbf16>
    %125 = vector.shape_cast %124 : vector<1x64x64xbf16> to vector<64x64xbf16>
    %cst_39 = arith.constant dense<0.000000e+00> : vector<16x64xf32>
    %126 = tpu.matmul %123, %125, %cst_39 {dimension_numbers = #tpu.dot_dimension_numbers<[1], [0], [0], [1], [0, 0, 1, 1], [], []>} : vector<16x64xbf16>, vector<64x64xbf16>, vector<16x64xf32> -> vector<16x64xf32>
    %127 = vector.broadcast %6 : vector<1x64xf32> to vector<16x64xf32>
    %128 = arith.addf %126, %127 : vector<16x64xf32>
    %c0_40 = arith.constant 0 : index
    %c0_41 = arith.constant 0 : index
    %c0_42 = arith.constant 0 : index
    %129 = vector.load %arg10[%c0_40, %c0_41, %c0_42] : memref<1x64x64xbf16, #tpu.memory_space<vmem>>, vector<1x64x64xbf16>
    %130 = vector.shape_cast %129 : vector<1x64x64xbf16> to vector<64x64xbf16>
    %cst_43 = arith.constant dense<0.000000e+00> : vector<32x64xf32>
    %131 = tpu.matmul %18, %130, %cst_43 {dimension_numbers = #tpu.dot_dimension_numbers<[1], [0], [0], [1], [0, 0, 1, 1], [], []>} : vector<32x64xbf16>, vector<64x64xbf16>, vector<32x64xf32> -> vector<32x64xf32>
    %132 = vector.broadcast %7 : vector<1x64xf32> to vector<32x64xf32>
    %133 = arith.addf %131, %132 : vector<32x64xf32>
    %c0_44 = arith.constant 0 : index
    %c0_45 = arith.constant 0 : index
    %c0_46 = arith.constant 0 : index
    %134 = vector.load %arg11[%c0_44, %c0_45, %c0_46] : memref<1x64x64xbf16, #tpu.memory_space<vmem>>, vector<1x64x64xbf16>
    %135 = vector.shape_cast %134 : vector<1x64x64xbf16> to vector<64x64xbf16>
    %cst_47 = arith.constant dense<0.000000e+00> : vector<32x64xf32>
    %136 = tpu.matmul %18, %135, %cst_47 {dimension_numbers = #tpu.dot_dimension_numbers<[1], [0], [0], [1], [0, 0, 1, 1], [], []>} : vector<32x64xbf16>, vector<64x64xbf16>, vector<32x64xf32> -> vector<32x64xf32>
    %137 = vector.broadcast %8 : vector<1x64xf32> to vector<32x64xf32>
    %138 = arith.addf %136, %137 : vector<32x64xf32>
    %139 = vector.extract_strided_slice %128 {offsets = [0, 0], sizes = [16, 16], strides = [1, 1]} : vector<16x64xf32> to vector<16x16xf32>
    %140 = vector.extract_strided_slice %128 {offsets = [0, 16], sizes = [16, 16], strides = [1, 1]} : vector<16x64xf32> to vector<16x16xf32>
    %141 = vector.extract_strided_slice %128 {offsets = [0, 32], sizes = [16, 16], strides = [1, 1]} : vector<16x64xf32> to vector<16x16xf32>
    %142 = vector.extract_strided_slice %128 {offsets = [0, 48], sizes = [16, 16], strides = [1, 1]} : vector<16x64xf32> to vector<16x16xf32>
    %143 = vector.shape_cast %139 : vector<16x16xf32> to vector<1x16x16xf32>
    %144 = vector.shape_cast %140 : vector<16x16xf32> to vector<1x16x16xf32>
    %145 = vector.shape_cast %141 : vector<16x16xf32> to vector<1x16x16xf32>
    %146 = vector.shape_cast %142 : vector<16x16xf32> to vector<1x16x16xf32>
    %147 = tpu.concatenate %143, %144, %145, %146 in 0 : vector<1x16x16xf32>, vector<1x16x16xf32>, vector<1x16x16xf32>, vector<1x16x16xf32> -> vector<4x16x16xf32>
    %148 = arith.truncf %147 : vector<4x16x16xf32> to vector<4x16x16xbf16>
    %149 = vector.extract_strided_slice %133 {offsets = [0, 0], sizes = [32, 16], strides = [1, 1]} : vector<32x64xf32> to vector<32x16xf32>
    %150 = vector.extract_strided_slice %133 {offsets = [0, 16], sizes = [32, 16], strides = [1, 1]} : vector<32x64xf32> to vector<32x16xf32>
    %151 = vector.extract_strided_slice %133 {offsets = [0, 32], sizes = [32, 16], strides = [1, 1]} : vector<32x64xf32> to vector<32x16xf32>
    %152 = vector.extract_strided_slice %133 {offsets = [0, 48], sizes = [32, 16], strides = [1, 1]} : vector<32x64xf32> to vector<32x16xf32>
    %153 = vector.shape_cast %149 : vector<32x16xf32> to vector<1x32x16xf32>
    %154 = vector.shape_cast %150 : vector<32x16xf32> to vector<1x32x16xf32>
    %155 = vector.shape_cast %151 : vector<32x16xf32> to vector<1x32x16xf32>
    %156 = vector.shape_cast %152 : vector<32x16xf32> to vector<1x32x16xf32>
    %157 = tpu.concatenate %153, %154, %155, %156 in 0 : vector<1x32x16xf32>, vector<1x32x16xf32>, vector<1x32x16xf32>, vector<1x32x16xf32> -> vector<4x32x16xf32>
    %158 = arith.truncf %157 : vector<4x32x16xf32> to vector<4x32x16xbf16>
    %159 = vector.extract_strided_slice %138 {offsets = [0, 0], sizes = [32, 16], strides = [1, 1]} : vector<32x64xf32> to vector<32x16xf32>
    %160 = vector.extract_strided_slice %138 {offsets = [0, 16], sizes = [32, 16], strides = [1, 1]} : vector<32x64xf32> to vector<32x16xf32>
    %161 = vector.extract_strided_slice %138 {offsets = [0, 32], sizes = [32, 16], strides = [1, 1]} : vector<32x64xf32> to vector<32x16xf32>
    %162 = vector.extract_strided_slice %138 {offsets = [0, 48], sizes = [32, 16], strides = [1, 1]} : vector<32x64xf32> to vector<32x16xf32>
    %163 = vector.shape_cast %159 : vector<32x16xf32> to vector<1x32x16xf32>
    %164 = vector.shape_cast %160 : vector<32x16xf32> to vector<1x32x16xf32>
    %165 = vector.shape_cast %161 : vector<32x16xf32> to vector<1x32x16xf32>
    %166 = vector.shape_cast %162 : vector<32x16xf32> to vector<1x32x16xf32>
    %167 = tpu.concatenate %163, %164, %165, %166 in 0 : vector<1x32x16xf32>, vector<1x32x16xf32>, vector<1x32x16xf32>, vector<1x32x16xf32> -> vector<4x32x16xf32>
    %168 = arith.truncf %167 : vector<4x32x16xf32> to vector<4x32x16xbf16>
    "tpu.trace_start"() <{level = 10 : i32, message = "hnd,hmd->hnm"}> : () -> ()
    %cst_48 = arith.constant dense<0.000000e+00> : vector<4x16x32xf32>
    %169 = tpu.matmul %148, %158, %cst_48 {dimension_numbers = #tpu.dot_dimension_numbers<[2], [2], [1], [1], [0, 0, 0, 1, 1, 1], [0], [0]>} : vector<4x16x16xbf16>, vector<4x32x16xbf16>, vector<4x16x32xf32> -> vector<4x16x32xf32>
    "tpu.trace_stop"() : () -> ()
    %cst_49 = arith.constant dense<0xFF800000> : vector<4x16xf32>
    %170 = vector.multi_reduction <maximumf>, %169, %cst_49 [2] : vector<4x16x32xf32> to vector<4x16xf32>
    %171 = vector.shape_cast %170 : vector<4x16xf32> to vector<4x16x1xf32>
    %172 = vector.broadcast %171 : vector<4x16x1xf32> to vector<4x16x32xf32>
    %173 = arith.subf %169, %172 : vector<4x16x32xf32>
    %174 = math.exp %173 : vector<4x16x32xf32>
    %cst_50 = arith.constant dense<0.000000e+00> : vector<4x16xf32>
    %175 = vector.multi_reduction <add>, %174, %cst_50 [2] : vector<4x16x32xf32> to vector<4x16xf32>
    %176 = vector.shape_cast %175 : vector<4x16xf32> to vector<4x16x1xf32>
    %177 = tpu.reciprocal %176 {approx = true} : vector<4x16x1xf32> -> vector<4x16x1xf32>
    %178 = vector.broadcast %177 : vector<4x16x1xf32> to vector<4x16x32xf32>
    %179 = arith.mulf %174, %178 : vector<4x16x32xf32>
    %180 = arith.truncf %179 : vector<4x16x32xf32> to vector<4x16x32xbf16>
    "tpu.trace_start"() <{level = 10 : i32, message = "hnm,hmd->hnd"}> : () -> ()
    %cst_51 = arith.constant dense<0.000000e+00> : vector<4x16x16xf32>
    %181 = tpu.matmul %180, %168, %cst_51 {dimension_numbers = #tpu.dot_dimension_numbers<[2], [1], [1], [2], [0, 0, 0, 1, 1, 2], [0], [0]>} : vector<4x16x32xbf16>, vector<4x32x16xbf16>, vector<4x16x16xf32> -> vector<4x16x16xf32>
    "tpu.trace_stop"() : () -> ()
    %182 = vector.extract_strided_slice %181 {offsets = [0, 0, 0], sizes = [1, 16, 16], strides = [1, 1, 1]} : vector<4x16x16xf32> to vector<1x16x16xf32>
    %183 = vector.shape_cast %182 : vector<1x16x16xf32> to vector<16x16xf32>
    %184 = vector.extract_strided_slice %181 {offsets = [1, 0, 0], sizes = [1, 16, 16], strides = [1, 1, 1]} : vector<4x16x16xf32> to vector<1x16x16xf32>
    %185 = vector.shape_cast %184 : vector<1x16x16xf32> to vector<16x16xf32>
    %186 = vector.extract_strided_slice %181 {offsets = [2, 0, 0], sizes = [1, 16, 16], strides = [1, 1, 1]} : vector<4x16x16xf32> to vector<1x16x16xf32>
    %187 = vector.shape_cast %186 : vector<1x16x16xf32> to vector<16x16xf32>
    %188 = vector.extract_strided_slice %181 {offsets = [3, 0, 0], sizes = [1, 16, 16], strides = [1, 1, 1]} : vector<4x16x16xf32> to vector<1x16x16xf32>
    %189 = vector.shape_cast %188 : vector<1x16x16xf32> to vector<16x16xf32>
    %190 = tpu.concatenate %183, %185, %187, %189 in 1 : vector<16x16xf32>, vector<16x16xf32>, vector<16x16xf32>, vector<16x16xf32> -> vector<16x64xf32>
    %191 = arith.truncf %190 : vector<16x64xf32> to vector<16x64xbf16>
    %c0_52 = arith.constant 0 : index
    %c0_53 = arith.constant 0 : index
    %c0_54 = arith.constant 0 : index
    %192 = vector.load %arg12[%c0_52, %c0_53, %c0_54] : memref<1x64x64xbf16, #tpu.memory_space<vmem>>, vector<1x64x64xbf16>
    %193 = vector.shape_cast %192 : vector<1x64x64xbf16> to vector<64x64xbf16>
    %cst_55 = arith.constant dense<0.000000e+00> : vector<16x64xf32>
    %194 = tpu.matmul %191, %193, %cst_55 {dimension_numbers = #tpu.dot_dimension_numbers<[1], [0], [0], [1], [0, 0, 1, 1], [], []>} : vector<16x64xbf16>, vector<64x64xbf16>, vector<16x64xf32> -> vector<16x64xf32>
    %195 = vector.broadcast %9 : vector<1x64xf32> to vector<16x64xf32>
    %196 = arith.addf %194, %195 : vector<16x64xf32>
    %197 = arith.addf %104, %196 : vector<16x64xf32>
    %cst_56 = arith.constant dense<0.000000e+00> : vector<16xf32>
    %198 = vector.multi_reduction <add>, %197, %cst_56 [1] : vector<16x64xf32> to vector<16xf32>
    %199 = vector.shape_cast %198 : vector<16xf32> to vector<16x1xf32>
    %cst_57 = arith.constant 6.400000e+01 : f32
    %200 = vector.broadcast %cst_57 : f32 to vector<16x1xf32>
    %201 = arith.divf %199, %200 : vector<16x1xf32>
    %202 = vector.broadcast %201 : vector<16x1xf32> to vector<16x64xf32>
    %203 = arith.subf %197, %202 : vector<16x64xf32>
    %204 = arith.mulf %203, %203 : vector<16x64xf32>
    %cst_58 = arith.constant dense<0.000000e+00> : vector<16xf32>
    %205 = vector.multi_reduction <add>, %204, %cst_58 [1] : vector<16x64xf32> to vector<16xf32>
    %206 = vector.shape_cast %205 : vector<16xf32> to vector<16x1xf32>
    %cst_59 = arith.constant 6.400000e+01 : f32
    %207 = vector.broadcast %cst_59 : f32 to vector<16x1xf32>
    %208 = arith.divf %206, %207 : vector<16x1xf32>
    %209 = vector.broadcast %201 : vector<16x1xf32> to vector<16x64xf32>
    %210 = arith.subf %197, %209 : vector<16x64xf32>
    %cst_60 = arith.constant 9.99999974E-6 : f32
    %211 = vector.broadcast %cst_60 : f32 to vector<16x1xf32>
    %212 = arith.addf %208, %211 : vector<16x1xf32>
    %213 = math.rsqrt %212 : vector<16x1xf32>
    %214 = vector.broadcast %213 : vector<16x1xf32> to vector<16x64xf32>
    %215 = arith.mulf %210, %214 : vector<16x64xf32>
    %216 = arith.truncf %215 : vector<16x64xf32> to vector<16x64xbf16>
    %c0_61 = arith.constant 0 : index
    %c0_62 = arith.constant 0 : index
    %c0_63 = arith.constant 0 : index
    %217 = vector.load %arg13[%c0_61, %c0_62, %c0_63] : memref<1x64x256xbf16, #tpu.memory_space<vmem>>, vector<1x64x256xbf16>
    %218 = vector.shape_cast %217 : vector<1x64x256xbf16> to vector<64x256xbf16>
    %cst_64 = arith.constant dense<0.000000e+00> : vector<16x256xf32>
    %219 = tpu.matmul %216, %218, %cst_64 {dimension_numbers = #tpu.dot_dimension_numbers<[1], [0], [0], [1], [0, 0, 1, 1], [], []>} : vector<16x64xbf16>, vector<64x256xbf16>, vector<16x256xf32> -> vector<16x256xf32>
    %220 = vector.broadcast %14 : vector<1x256xf32> to vector<16x256xf32>
    %221 = arith.addf %219, %220 : vector<16x256xf32>
    %cst_65 = arith.constant 5.000000e-01 : f32
    %222 = vector.broadcast %cst_65 : f32 to vector<16x256xf32>
    %223 = arith.mulf %222, %221 : vector<16x256xf32>
    %cst_66 = arith.constant 0.707106769 : f32
    %224 = vector.broadcast %cst_66 : f32 to vector<16x256xf32>
    %225 = arith.mulf %221, %224 : vector<16x256xf32>
    %226 = math.erf %225 : vector<16x256xf32>
    %cst_67 = arith.constant 1.000000e+00 : f32
    %227 = vector.broadcast %cst_67 : f32 to vector<16x256xf32>
    %228 = arith.addf %227, %226 : vector<16x256xf32>
    %229 = arith.mulf %223, %228 : vector<16x256xf32>
    %230 = arith.truncf %229 : vector<16x256xf32> to vector<16x256xbf16>
    %c0_68 = arith.constant 0 : index
    %c0_69 = arith.constant 0 : index
    %c0_70 = arith.constant 0 : index
    %231 = vector.load %arg14[%c0_68, %c0_69, %c0_70] : memref<1x256x64xbf16, #tpu.memory_space<vmem>>, vector<1x256x64xbf16>
    %232 = vector.shape_cast %231 : vector<1x256x64xbf16> to vector<256x64xbf16>
    %cst_71 = arith.constant dense<0.000000e+00> : vector<16x64xf32>
    %233 = tpu.matmul %230, %232, %cst_71 {dimension_numbers = #tpu.dot_dimension_numbers<[1], [0], [0], [1], [0, 0, 1, 1], [], []>} : vector<16x256xbf16>, vector<256x64xbf16>, vector<16x64xf32> -> vector<16x64xf32>
    %234 = arith.addf %197, %233 : vector<16x64xf32>
    %235 = vector.broadcast %10 : vector<1x64xf32> to vector<16x64xf32>
    %236 = arith.addf %234, %235 : vector<16x64xf32>
    %237 = vector.shape_cast %236 : vector<16x64xf32> to vector<1x16x64xf32>
    %c0_72 = arith.constant 0 : index
    %c0_73 = arith.constant 0 : index
    %c0_74 = arith.constant 0 : index
    %238 = vector.load %arg15[%c0_72, %c0_73, %c0_74] : memref<1x16x64xf32, #tpu.memory_space<vmem>>, vector<1x16x64xf32>
    tpu.vector_store %arg15[%c0_72, %c0_73, %c0_74], %237 {strides = array<i32>} : memref<1x16x64xf32, #tpu.memory_space<vmem>>, vector<1x16x64xf32>,
    return
  }
  func.func @transform_0(%arg0: i32, %arg1: i32) -> (i32, i32, i32) {
    %c0_i32 = arith.constant 0 : i32
    %c0_i32_0 = arith.constant 0 : i32
    %c0_i32_1 = arith.constant 0 : i32
    return %arg0, %c0_i32, %c0_i32_0 : i32, i32, i32
  }
  func.func @transform_1(%arg0: i32, %arg1: i32) -> (i32, i32, i32) {
    %c0_i32 = arith.constant 0 : i32
    %c0_i32_0 = arith.constant 0 : i32
    %c0_i32_1 = arith.constant 0 : i32
    return %arg0, %c0_i32, %c0_i32_0 : i32, i32, i32
  }
  func.func @transform_2(%arg0: i32, %arg1: i32) -> (i32, i32, i32) {
    %c0_i32 = arith.constant 0 : i32
    %c0_i32_0 = arith.constant 0 : i32
    %c0_i32_1 = arith.constant 0 : i32
    return %arg1, %c0_i32, %c0_i32_0 : i32, i32, i32
  }
  func.func @transform_3(%arg0: i32, %arg1: i32) -> (i32, i32, i32) {
    %c0_i32 = arith.constant 0 : i32
    %c0_i32_0 = arith.constant 0 : i32
    %c0_i32_1 = arith.constant 0 : i32
    return %arg1, %c0_i32, %c0_i32_0 : i32, i32, i32
  }
  func.func @transform_4(%arg0: i32, %arg1: i32) -> (i32, i32, i32) {
    %c0_i32 = arith.constant 0 : i32
    %c0_i32_0 = arith.constant 0 : i32
    %c0_i32_1 = arith.constant 0 : i32
    return %arg1, %c0_i32, %c0_i32_0 : i32, i32, i32
  }
  func.func @transform_5(%arg0: i32, %arg1: i32) -> (i32, i32, i32) {
    %c0_i32 = arith.constant 0 : i32
    %c0_i32_0 = arith.constant 0 : i32
    %c0_i32_1 = arith.constant 0 : i32
    return %arg1, %c0_i32, %c0_i32_0 : i32, i32, i32
  }
  func.func @transform_6(%arg0: i32, %arg1: i32) -> (i32, i32, i32) {
    %c0_i32 = arith.constant 0 : i32
    %c0_i32_0 = arith.constant 0 : i32
    %c0_i32_1 = arith.constant 0 : i32
    return %arg1, %c0_i32, %c0_i32_0 : i32, i32, i32
  }
  func.func @transform_7(%arg0: i32, %arg1: i32) -> (i32, i32, i32) {
    %c0_i32 = arith.constant 0 : i32
    %c0_i32_0 = arith.constant 0 : i32
    %c0_i32_1 = arith.constant 0 : i32
    return %arg1, %c0_i32, %c0_i32_0 : i32, i32, i32
  }
  func.func @transform_8(%arg0: i32, %arg1: i32) -> (i32, i32, i32) {
    %c0_i32 = arith.constant 0 : i32
    %c0_i32_0 = arith.constant 0 : i32
    %c0_i32_1 = arith.constant 0 : i32
    return %arg1, %c0_i32, %c0_i32_0 : i32, i32, i32
  }
  func.func @transform_9(%arg0: i32, %arg1: i32) -> (i32, i32, i32) {
    %c0_i32 = arith.constant 0 : i32
    %c0_i32_0 = arith.constant 0 : i32
    %c0_i32_1 = arith.constant 0 : i32
    return %arg1, %c0_i32, %c0_i32_0 : i32, i32, i32
  }
  func.func @transform_10(%arg0: i32, %arg1: i32) -> (i32, i32, i32) {
    %c0_i32 = arith.constant 0 : i32
    %c0_i32_0 = arith.constant 0 : i32
    %c0_i32_1 = arith.constant 0 : i32
    return %arg1, %c0_i32, %c0_i32_0 : i32, i32, i32
  }
  func.func @transform_11(%arg0: i32, %arg1: i32) -> (i32, i32, i32) {
    %c0_i32 = arith.constant 0 : i32
    %c0_i32_0 = arith.constant 0 : i32
    %c0_i32_1 = arith.constant 0 : i32
    return %arg1, %c0_i32, %c0_i32_0 : i32, i32, i32
  }
  func.func @transform_12(%arg0: i32, %arg1: i32) -> (i32, i32, i32) {
    %c0_i32 = arith.constant 0 : i32
    %c0_i32_0 = arith.constant 0 : i32
    %c0_i32_1 = arith.constant 0 : i32
    return %arg1, %c0_i32, %c0_i32_0 : i32, i32, i32
  }
  func.func @transform_13(%arg0: i32, %arg1: i32) -> (i32, i32, i32) {
    %c0_i32 = arith.constant 0 : i32
    %c0_i32_0 = arith.constant 0 : i32
    %c0_i32_1 = arith.constant 0 : i32
    return %arg0, %c0_i32, %c0_i32_0 : i32, i32, i32
  }
}

</mosaic_0001>

<llo_original>
// kernel: transformer_decoder_fused.1
$region0: #{transformer_decoder_fused.1}
  #allocation0 [shape = 'u32[]', space=smem, size = 0x4, offset = 0x4, fixed_abs, tag = 'smem constant byte address 0x4 - core index']
  #allocation1 [shape = 'u32[72,128]{1,0:T(1,128)}', space=vmem, size = 0x9000, scoped, tag = 'internal scratch']
  %s0 = inlined_call_operand.hbm [shape: f32[2,16,64], index: 0, kind: input, shape index: {}]
  %s1 = inlined_call_operand.vmem [shape: bf16[2,32,64], index: 1, kind: input, shape index: {}]
  %s2 = inlined_call_operand.vmem [shape: f32[2,6,64], index: 2, kind: input, shape index: {}]
  %s3 = inlined_call_operand.vmem [shape: f32[2,1,192], index: 3, kind: input, shape index: {}]
  %s4 = inlined_call_operand.vmem [shape: f32[2,1,256], index: 4, kind: input, shape index: {}]
  %s5 = inlined_call_operand.vmem [shape: bf16[2,64,192], index: 5, kind: input, shape index: {}]
  %s6 = inlined_call_operand.vmem [shape: bf16[2,64,64], index: 6, kind: input, shape index: {}]
  %s7 = inlined_call_operand.vmem [shape: bf16[2,64,64], index: 7, kind: input, shape index: {}]
  %s8 = inlined_call_operand.vmem [shape: bf16[2,64,64], index: 8, kind: input, shape index: {}]
  %s9 = inlined_call_operand.hbm [shape: bf16[2,64,64], index: 9, kind: input, shape index: {}]
  %s10 = inlined_call_operand.hbm [shape: bf16[2,64,64], index: 10, kind: input, shape index: {}]
  %s11 = inlined_call_operand.vmem [shape: bf16[2,64,256], index: 11, kind: input, shape index: {}]
  %s12 = inlined_call_operand.vmem [shape: bf16[2,256,64], index: 12, kind: input, shape index: {}]
  %s13 = inlined_call_operand.hbm [shape: f32[2,16,64], index: 13, kind: output, shape index: {}]
  %s14 = sld [smem:[#allocation0]]
  $region101: #{transformer_decoder_fused.1} parent=0
    _
  %s16 = ssub.s32 1, %s14
  %s17 = scalar_select 0, %s16, %s14
  $region1: #{transformer_decoder_fused.1} parent=0
    #allocation2 [shape = 'u8[16384]{0}', space=vmem, size = 0x4000, scoped, tag = 'input window, operand 0']
    #allocation3 [shape = 's32[2]{0}', space=sflag, size = 0x8, scoped, tag = 'scoped memory for transformer_decoder_fused.1']
    #allocation4 [shape = 's32[2]{0}', space=sflag, size = 0x8, scoped, tag = 'scoped memory for transformer_decoder_fused.1']
    #allocation5 [shape = 'u8[32768]{0}', space=vmem, size = 0x8000, scoped, tag = 'input window, operand 9']
    #allocation6 [shape = 's32[2]{0}', space=sflag, size = 0x8, scoped, tag = 'scoped memory for transformer_decoder_fused.1']
    #allocation7 [shape = 'u8[32768]{0}', space=vmem, size = 0x8000, scoped, tag = 'input window, operand 10']
    #allocation8 [shape = 'u8[16384]{0}', space=vmem, size = 0x4000, scoped, tag = 'output window, operand 0']
    %18 = vsyncpa [#allocation3], 0
    %s19 = scalar_lea.sflag [#allocation3], 1
    %20 = vsyncpa %s19, 0
    %21 = vsyncpa [#allocation6], 0
    %s22 = scalar_lea.sflag [#allocation6], 1
    %23 = vsyncpa %s22, 0
    %24 = vsyncpa [#allocation4], 0
    %s25 = scalar_lea.sflag [#allocation4], 1
    %26 = vsyncpa %s25, 0
    loop: start=0, step=1, limit=6
    $region2: #{transformer_decoder_fused.1} parent=1 // loop_pre_header
      _
    $region3: #{transformer_decoder_fused.1} parent=1 // loop_header
      %s28 = sphi 0, %s32
      %p29 = scmp.ge.s32.totalorder %s28, 6
      %s35 = sphi 0, %s47
      %s36 = sphi 0, %s43
      %s37 = sphi 0, %s35
      %s38 = sphi 0, %s36
      %s39 = sphi 0, %s37
      %s40 = sphi 0, %s38
      %s50 = sphi 0, %s52
      %s53 = sphi 0, %s50
      %s54 = sphi 0, %s53
      %s70 = sphi 0, %s54
      %s76 = sphi 0, %s78
      %s79 = sphi 0, %s76
      %s80 = sphi 0, %s79
      %s96 = sphi 0, %s80
      %s102 = sphi 0, %s104
      %s105 = sphi 0, %s102
      %s106 = sphi 0, %s105
      %s122 = sphi 0, %s106
      %s128 = sphi 0, %s130
      %s131 = sphi 0, %s128
      %s132 = sphi 0, %s131
      %s148 = sphi 0, %s132
      %s154 = sphi 0, %s156
      %s157 = sphi 0, %s154
      %s158 = sphi 0, %s157
      %s174 = sphi 0, %s158
      %s180 = sphi 0, %s182
      %s183 = sphi 0, %s180
      %s184 = sphi 0, %s183
      %s200 = sphi 0, %s184
      %s206 = sphi 0, %s208
      %s209 = sphi 0, %s206
      %s210 = sphi 0, %s209
      %s226 = sphi 0, %s210
      %s232 = sphi 0, %s234
      %s235 = sphi 0, %s232
      %s236 = sphi 0, %s235
      %s252 = sphi 0, %s236
      %s258 = sphi 0, %s260
      %s261 = sphi 0, %s258
      %s262 = sphi 0, %s261
      %s278 = sphi 0, %s262
      %s284 = sphi 0, %s286
      %s287 = sphi 0, %s284
      %s288 = sphi 0, %s287
      %s304 = sphi 0, %s288
      %s310 = sphi 0, %s312
      %s313 = sphi 0, %s310
      %s314 = sphi 0, %s313
      %s330 = sphi 0, %s314
      %s336 = sphi 0, %s338
      %s339 = sphi 0, %s336
      %s340 = sphi 0, %s339
      %s356 = sphi 0, %s340
      %s362 = sphi 0, %s364
      %s365 = sphi 0, %s362
      %s366 = sphi 0, %s365
      %s382 = sphi 0, %s366
      %s388 = sphi 0, %s390
      %s391 = sphi 0, %s388
      %s392 = sphi 0, %s391
      %s408 = sphi 0, %s392
    $region4: #{transformer_decoder_fused.1} parent=1 // loop_header_branch
      %31 = sbr.rel (%p29) target = $region8
    $region5: #{transformer_decoder_fused.1} parent=1 // loop_body
      %s33 = ssub.s32 %s28, 1
      %s34 = ssub.s32 %s28, 2
      %s41 = sadd.s32 1, %s36
      %p42 = scmp.ge.s32.totalorder %s41, 2
      %s43 = scalar_select %p42, 0, %s41
      %s44 = sadd.s32 1, %s35
      %s45 = scalar_select %p42, %s44, %s35
      %p46 = scmp.ge.s32.totalorder %s45, 2
      %s47 = scalar_select %p46, 0, %s45
      %s48 = ssub.s32 %s35, %s47
      %p49 = scmp.eq.s32.totalorder %s48, 0
      %s51 = sadd.s32 %s50, 1
      %s52 = scalar_select %p49, %s50, %s51
      %p55 = pneg %p49
      %p56 = scmp.eq.s32.totalorder %s28, 3
      %p57 = por %p55, %p56
      %p58 = scmp.ne.s32.totalorder %s50, %s53
      %p59 = scmp.eq.s32.totalorder %s28, 0
      %p60 = por %p58, %p59
      %p61 = scmp.ne.s32.totalorder %s50, %s53
      %p62 = scmp.eq.s32.totalorder %s33, 3
      %p63 = por %p61, %p62
      %p64 = scmp.ne.s32.totalorder %s53, %s54
      %p65 = scmp.eq.s32.totalorder %s33, 0
      %p66 = por %p64, %p65
      %p67 = scmp.ne.s32.totalorder %s53, %s54
      %p68 = scmp.eq.s32.totalorder %s34, 3
      %p69 = por %p67, %p68
      %p71 = scmp.ne.s32.totalorder %s54, %s70
      %p72 = scmp.eq.s32.totalorder %s34, 0
      %p73 = por %p71, %p72
      %s74 = ssub.s32 %s35, %s47
      %p75 = scmp.eq.s32.totalorder %s74, 0
      %s77 = sadd.s32 %s76, 1
      %s78 = scalar_select %p75, %s76, %s77
      %p81 = pneg %p75
      %p82 = scmp.eq.s32.totalorder %s28, 3
      %p83 = por %p81, %p82
      %p84 = scmp.ne.s32.totalorder %s76, %s79
      %p85 = scmp.eq.s32.totalorder %s28, 0
      %p86 = por %p84, %p85
      %p87 = scmp.ne.s32.totalorder %s76, %s79
      %p88 = scmp.eq.s32.totalorder %s33, 3
      %p89 = por %p87, %p88
      %p90 = scmp.ne.s32.totalorder %s79, %s80
      %p91 = scmp.eq.s32.totalorder %s33, 0
      %p92 = por %p90, %p91
      %p93 = scmp.ne.s32.totalorder %s79, %s80
      %p94 = scmp.eq.s32.totalorder %s34, 3
      %p95 = por %p93, %p94
      %p97 = scmp.ne.s32.totalorder %s80, %s96
      %p98 = scmp.eq.s32.totalorder %s34, 0
      %p99 = por %p97, %p98
      %s100 = ssub.s32 %s36, %s43
      %p101 = scmp.eq.s32.totalorder %s100, 0
      %s103 = sadd.s32 %s102, 1
      %s104 = scalar_select %p101, %s102, %s103
      %p107 = pneg %p101
      %p108 = scmp.eq.s32.totalorder %s28, 3
      %p109 = por %p107, %p108
      %p110 = scmp.ne.s32.totalorder %s102, %s105
      %p111 = scmp.eq.s32.totalorder %s28, 0
      %p112 = por %p110, %p111
      %p113 = scmp.ne.s32.totalorder %s102, %s105
      %p114 = scmp.eq.s32.totalorder %s33, 3
      %p115 = por %p113, %p114
      %p116 = scmp.ne.s32.totalorder %s105, %s106
      %p117 = scmp.eq.s32.totalorder %s33, 0
      %p118 = por %p116, %p117
      %p119 = scmp.ne.s32.totalorder %s105, %s106
      %p120 = scmp.eq.s32.totalorder %s34, 3
      %p121 = por %p119, %p120
      %p123 = scmp.ne.s32.totalorder %s106, %s122
      %p124 = scmp.eq.s32.totalorder %s34, 0
      %p125 = por %p123, %p124
      %s126 = ssub.s32 %s36, %s43
      %p127 = scmp.eq.s32.totalorder %s126, 0
      %s129 = sadd.s32 %s128, 1
      %s130 = scalar_select %p127, %s128, %s129
      %p133 = pneg %p127
      %p134 = scmp.eq.s32.totalorder %s28, 3
      %p135 = por %p133, %p134
      %p136 = scmp.ne.s32.totalorder %s128, %s131
      %p137 = scmp.eq.s32.totalorder %s28, 0
      %p138 = por %p136, %p137
      %p139 = scmp.ne.s32.totalorder %s128, %s131
      %p140 = scmp.eq.s32.totalorder %s33, 3
      %p141 = por %p139, %p140
      %p142 = scmp.ne.s32.totalorder %s131, %s132
      %p143 = scmp.eq.s32.totalorder %s33, 0
      %p144 = por %p142, %p143
      %p145 = scmp.ne.s32.totalorder %s131, %s132
      %p146 = scmp.eq.s32.totalorder %s34, 3
      %p147 = por %p145, %p146
      %p149 = scmp.ne.s32.totalorder %s132, %s148
      %p150 = scmp.eq.s32.totalorder %s34, 0
      %p151 = por %p149, %p150
      %s152 = ssub.s32 %s36, %s43
      %p153 = scmp.eq.s32.totalorder %s152, 0
      %s155 = sadd.s32 %s154, 1
      %s156 = scalar_select %p153, %s154, %s155
      %p159 = pneg %p153
      %p160 = scmp.eq.s32.totalorder %s28, 3
      %p161 = por %p159, %p160
      %p162 = scmp.ne.s32.totalorder %s154, %s157
      %p163 = scmp.eq.s32.totalorder %s28, 0
      %p164 = por %p162, %p163
      %p165 = scmp.ne.s32.totalorder %s154, %s157
      %p166 = scmp.eq.s32.totalorder %s33, 3
      %p167 = por %p165, %p166
      %p168 = scmp.ne.s32.totalorder %s157, %s158
      %p169 = scmp.eq.s32.totalorder %s33, 0
      %p170 = por %p168, %p169
      %p171 = scmp.ne.s32.totalorder %s157, %s158
      %p172 = scmp.eq.s32.totalorder %s34, 3
      %p173 = por %p171, %p172
      %p175 = scmp.ne.s32.totalorder %s158, %s174
      %p176 = scmp.eq.s32.totalorder %s34, 0
      %p177 = por %p175, %p176
      %s178 = ssub.s32 %s36, %s43
      %p179 = scmp.eq.s32.totalorder %s178, 0
      %s181 = sadd.s32 %s180, 1
      %s182 = scalar_select %p179, %s180, %s181
      %p185 = pneg %p179
      %p186 = scmp.eq.s32.totalorder %s28, 3
      %p187 = por %p185, %p186
      %p188 = scmp.ne.s32.totalorder %s180, %s183
      %p189 = scmp.eq.s32.totalorder %s28, 0
      %p190 = por %p188, %p189
      %p191 = scmp.ne.s32.totalorder %s180, %s183
      %p192 = scmp.eq.s32.totalorder %s33, 3
      %p193 = por %p191, %p192
      %p194 = scmp.ne.s32.totalorder %s183, %s184
      %p195 = scmp.eq.s32.totalorder %s33, 0
      %p196 = por %p194, %p195
      %p197 = scmp.ne.s32.totalorder %s183, %s184
      %p198 = scmp.eq.s32.totalorder %s34, 3
      %p199 = por %p197, %p198
      %p201 = scmp.ne.s32.totalorder %s184, %s200
      %p202 = scmp.eq.s32.totalorder %s34, 0
      %p203 = por %p201, %p202
      %s204 = ssub.s32 %s36, %s43
      %p205 = scmp.eq.s32.totalorder %s204, 0
      %s207 = sadd.s32 %s206, 1
      %s208 = scalar_select %p205, %s206, %s207
      %p211 = pneg %p205
      %p212 = scmp.eq.s32.totalorder %s28, 3
      %p213 = por %p211, %p212
      %p214 = scmp.ne.s32.totalorder %s206, %s209
      %p215 = scmp.eq.s32.totalorder %s28, 0
      %p216 = por %p214, %p215
      %p217 = scmp.ne.s32.totalorder %s206, %s209
      %p218 = scmp.eq.s32.totalorder %s33, 3
      %p219 = por %p217, %p218
      %p220 = scmp.ne.s32.totalorder %s209, %s210
      %p221 = scmp.eq.s32.totalorder %s33, 0
      %p222 = por %p220, %p221
      %p223 = scmp.ne.s32.totalorder %s209, %s210
      %p224 = scmp.eq.s32.totalorder %s34, 3
      %p225 = por %p223, %p224
      %p227 = scmp.ne.s32.totalorder %s210, %s226
      %p228 = scmp.eq.s32.totalorder %s34, 0
      %p229 = por %p227, %p228
      %s230 = ssub.s32 %s36, %s43
      %p231 = scmp.eq.s32.totalorder %s230, 0
      %s233 = sadd.s32 %s232, 1
      %s234 = scalar_select %p231, %s232, %s233
      %p237 = pneg %p231
      %p238 = scmp.eq.s32.totalorder %s28, 3
      %p239 = por %p237, %p238
      %p240 = scmp.ne.s32.totalorder %s232, %s235
      %p241 = scmp.eq.s32.totalorder %s28, 0
      %p242 = por %p240, %p241
      %p243 = scmp.ne.s32.totalorder %s232, %s235
      %p244 = scmp.eq.s32.totalorder %s33, 3
      %p245 = por %p243, %p244
      %p246 = scmp.ne.s32.totalorder %s235, %s236
      %p247 = scmp.eq.s32.totalorder %s33, 0
      %p248 = por %p246, %p247
      %p249 = scmp.ne.s32.totalorder %s235, %s236
      %p250 = scmp.eq.s32.totalorder %s34, 3
      %p251 = por %p249, %p250
      %p253 = scmp.ne.s32.totalorder %s236, %s252
      %p254 = scmp.eq.s32.totalorder %s34, 0
      %p255 = por %p253, %p254
      %s256 = ssub.s32 %s36, %s43
      %p257 = scmp.eq.s32.totalorder %s256, 0
      %s259 = sadd.s32 %s258, 1
      %s260 = scalar_select %p257, %s258, %s259
      %p263 = pneg %p257
      %p264 = scmp.eq.s32.totalorder %s28, 3
      %p265 = por %p263, %p264
      %p266 = scmp.ne.s32.totalorder %s258, %s261
      %p267 = scmp.eq.s32.totalorder %s28, 0
      %p268 = por %p266, %p267
      %p269 = scmp.ne.s32.totalorder %s258, %s261
      %p270 = scmp.eq.s32.totalorder %s33, 3
      %p271 = por %p269, %p270
      %p272 = scmp.ne.s32.totalorder %s261, %s262
      %p273 = scmp.eq.s32.totalorder %s33, 0
      %p274 = por %p272, %p273
      %p275 = scmp.ne.s32.totalorder %s261, %s262
      %p276 = scmp.eq.s32.totalorder %s34, 3
      %p277 = por %p275, %p276
      %p279 = scmp.ne.s32.totalorder %s262, %s278
      %p280 = scmp.eq.s32.totalorder %s34, 0
      %p281 = por %p279, %p280
      %s282 = ssub.s32 %s36, %s43
      %p283 = scmp.eq.s32.totalorder %s282, 0
      %s285 = sadd.s32 %s284, 1
      %s286 = scalar_select %p283, %s284, %s285
      %p289 = pneg %p283
      %p290 = scmp.eq.s32.totalorder %s28, 3
      %p291 = por %p289, %p290
      %p292 = scmp.ne.s32.totalorder %s284, %s287
      %p293 = scmp.eq.s32.totalorder %s28, 0
      %p294 = por %p292, %p293
      %p295 = scmp.ne.s32.totalorder %s284, %s287
      %p296 = scmp.eq.s32.totalorder %s33, 3
      %p297 = por %p295, %p296
      %p298 = scmp.ne.s32.totalorder %s287, %s288
      %p299 = scmp.eq.s32.totalorder %s33, 0
      %p300 = por %p298, %p299
      %p301 = scmp.ne.s32.totalorder %s287, %s288
      %p302 = scmp.eq.s32.totalorder %s34, 3
      %p303 = por %p301, %p302
      %p305 = scmp.ne.s32.totalorder %s288, %s304
      %p306 = scmp.eq.s32.totalorder %s34, 0
      %p307 = por %p305, %p306
      %s308 = ssub.s32 %s36, %s43
      %p309 = scmp.eq.s32.totalorder %s308, 0
      %s311 = sadd.s32 %s310, 1
      %s312 = scalar_select %p309, %s310, %s311
      %p315 = pneg %p309
      %p316 = scmp.eq.s32.totalorder %s28, 3
      %p317 = por %p315, %p316
      %p318 = scmp.ne.s32.totalorder %s310, %s313
      %p319 = scmp.eq.s32.totalorder %s28, 0
      %p320 = por %p318, %p319
      %p321 = scmp.ne.s32.totalorder %s310, %s313
      %p322 = scmp.eq.s32.totalorder %s33, 3
      %p323 = por %p321, %p322
      %p324 = scmp.ne.s32.totalorder %s313, %s314
      %p325 = scmp.eq.s32.totalorder %s33, 0
      %p326 = por %p324, %p325
      %p327 = scmp.ne.s32.totalorder %s313, %s314
      %p328 = scmp.eq.s32.totalorder %s34, 3
      %p329 = por %p327, %p328
      %p331 = scmp.ne.s32.totalorder %s314, %s330
      %p332 = scmp.eq.s32.totalorder %s34, 0
      %p333 = por %p331, %p332
      %s334 = ssub.s32 %s36, %s43
      %p335 = scmp.eq.s32.totalorder %s334, 0
      %s337 = sadd.s32 %s336, 1
      %s338 = scalar_select %p335, %s336, %s337
      %p341 = pneg %p335
      %p342 = scmp.eq.s32.totalorder %s28, 3
      %p343 = por %p341, %p342
      %p344 = scmp.ne.s32.totalorder %s336, %s339
      %p345 = scmp.eq.s32.totalorder %s28, 0
      %p346 = por %p344, %p345
      %p347 = scmp.ne.s32.totalorder %s336, %s339
      %p348 = scmp.eq.s32.totalorder %s33, 3
      %p349 = por %p347, %p348
      %p350 = scmp.ne.s32.totalorder %s339, %s340
      %p351 = scmp.eq.s32.totalorder %s33, 0
      %p352 = por %p350, %p351
      %p353 = scmp.ne.s32.totalorder %s339, %s340
      %p354 = scmp.eq.s32.totalorder %s34, 3
      %p355 = por %p353, %p354
      %p357 = scmp.ne.s32.totalorder %s340, %s356
      %p358 = scmp.eq.s32.totalorder %s34, 0
      %p359 = por %p357, %p358
      %s360 = ssub.s32 %s36, %s43
      %p361 = scmp.eq.s32.totalorder %s360, 0
      %s363 = sadd.s32 %s362, 1
      %s364 = scalar_select %p361, %s362, %s363
      %p367 = pneg %p361
      %p368 = scmp.eq.s32.totalorder %s28, 3
      %p369 = por %p367, %p368
      %p370 = scmp.ne.s32.totalorder %s362, %s365
      %p371 = scmp.eq.s32.totalorder %s28, 0
      %p372 = por %p370, %p371
      %p373 = scmp.ne.s32.totalorder %s362, %s365
      %p374 = scmp.eq.s32.totalorder %s33, 3
      %p375 = por %p373, %p374
      %p376 = scmp.ne.s32.totalorder %s365, %s366
      %p377 = scmp.eq.s32.totalorder %s33, 0
      %p378 = por %p376, %p377
      %p379 = scmp.ne.s32.totalorder %s365, %s366
      %p380 = scmp.eq.s32.totalorder %s34, 3
      %p381 = por %p379, %p380
      %p383 = scmp.ne.s32.totalorder %s366, %s382
      %p384 = scmp.eq.s32.totalorder %s34, 0
      %p385 = por %p383, %p384
      %s386 = ssub.s32 %s35, %s47
      %p387 = scmp.eq.s32.totalorder %s386, 0
      %s389 = sadd.s32 %s388, 1
      %s390 = scalar_select %p387, %s388, %s389
      %p393 = pneg %p387
      %p394 = scmp.eq.s32.totalorder %s28, 3
      %p395 = por %p393, %p394
      %p396 = scmp.ne.s32.totalorder %s388, %s391
      %p397 = scmp.eq.s32.totalorder %s28, 0
      %p398 = por %p396, %p397
      %p399 = scmp.ne.s32.totalorder %s388, %s391
      %p400 = scmp.eq.s32.totalorder %s33, 3
      %p401 = por %p399, %p400
      %p402 = scmp.ne.s32.totalorder %s391, %s392
      %p403 = scmp.eq.s32.totalorder %s33, 0
      %p404 = por %p402, %p403
      %p405 = scmp.ne.s32.totalorder %s391, %s392
      %p406 = scmp.eq.s32.totalorder %s34, 3
      %p407 = por %p405, %p406
      %p409 = scmp.ne.s32.totalorder %s392, %s408
      %p410 = scmp.eq.s32.totalorder %s34, 0
      %p411 = por %p409, %p410
      %p412 = scmp.le.s32.totalorder 1, %s28
      %p413 = scmp.lt.s32.totalorder %s28, 5
      %p414 = pnand %p412, %p413
      %p415 = pneg %p414
      // Predicated region
      $region9: #{transformer_decoder_fused.1} parent=5 // pred_check
        _
      $region10: #{transformer_decoder_fused.1} parent=5 // pred_check_branch
        %417 = sbr.rel (%p414) target = $region12
      $region11: #{transformer_decoder_fused.1} parent=5 // pred_region
        %s418 = ssub.s32 %s28, 1
      $region12: #{transformer_decoder_fused.1} parent=5 // pred_fallthru
        _
      %p419 = scmp.lt.s32.totalorder %s28, 4
      // Predicated region
      $region13: #{transformer_decoder_fused.1} parent=5 // pred_check
        %p420 = pneg %p419
      $region14: #{transformer_decoder_fused.1} parent=5 // pred_check_branch
        %422 = sbr.rel (%p420) target = $region16
      $region15: #{transformer_decoder_fused.1} parent=5 // pred_region
        // Predicated region
        $region17: #{transformer_decoder_fused.1} parent=15 // pred_check
          %p423 = pneg %p60
        $region18: #{transformer_decoder_fused.1} parent=15 // pred_check_branch
          %425 = sbr.rel (%p423) target = $region20
        $region19: #{transformer_decoder_fused.1} parent=15 // pred_region
          %s426 = sand.u32 %s50, 1
          %s427 = scalar_lea.sflag [#allocation3], %s426
          %s428 = sand.u32 %s50, 1
          %s429 = smul.addr %s428, 16
          %s430 = scalar_lea.vmem [#allocation2], %s429
          %432 = vsyncadd %s427, 0
          %s433 = smul.addr %s35, 2
          %s434 = smul.addr %s433, 8
          %s435 = scalar_lea.hbm %s0, %s434
          %s436 = sshll.u32 %s435, 4
          %s437 = int_to_ptr.hbm [resolvable:$true] %s436
          %s438 = sshll.u32 %s430, 4
          %s439 = int_to_ptr.vmem [resolvable:$true] %s438
          %444 = dma.hbm_to_vmem [thread:$0]  %s437, 256, %s439, %s427, 128, 128, 8
        $region20: #{transformer_decoder_fused.1} parent=15 // pred_fallthru
          _
        // Predicated region
        $region21: #{transformer_decoder_fused.1} parent=15 // pred_check
          %p445 = pneg %p86
        $region22: #{transformer_decoder_fused.1} parent=15 // pred_check_branch
          %447 = sbr.rel (%p445) target = $region24
        $region23: #{transformer_decoder_fused.1} parent=15 // pred_region
          %p448 = scmp.lt.s32.totalorder %s35, 1
          %s449 = scalar_select %p448, %s35, 1
          %s450 = smul.addr %s449, 4
          %s451 = smul.addr %s450, 4
          %s452 = scalar_lea.vmem %s1, %s451
        $region24: #{transformer_decoder_fused.1} parent=15 // pred_fallthru
          _
        // Predicated region
        $region25: #{transformer_decoder_fused.1} parent=15 // pred_check
          %p453 = pneg %p112
        $region26: #{transformer_decoder_fused.1} parent=15 // pred_check_branch
          %455 = sbr.rel (%p453) target = $region28
        $region27: #{transformer_decoder_fused.1} parent=15 // pred_region
          %p456 = scmp.lt.s32.totalorder %s36, 1
          %s457 = scalar_select %p456, %s36, 1
          %s458 = smul.addr %s457, 8
          %s459 = scalar_lea.vmem %s2, %s458
        $region28: #{transformer_decoder_fused.1} parent=15 // pred_fallthru
          _
        // Predicated region
        $region29: #{transformer_decoder_fused.1} parent=15 // pred_check
          %p460 = pneg %p138
        $region30: #{transformer_decoder_fused.1} parent=15 // pred_check_branch
          %462 = sbr.rel (%p460) target = $region32
        $region31: #{transformer_decoder_fused.1} parent=15 // pred_region
          %p463 = scmp.lt.s32.totalorder %s36, 1
          %s464 = scalar_select %p463, %s36, 1
          %s465 = smul.addr %s464, 2
          %s466 = scalar_lea.vmem %s3, %s465
        $region32: #{transformer_decoder_fused.1} parent=15 // pred_fallthru
          _
        // Predicated region
        $region33: #{transformer_decoder_fused.1} parent=15 // pred_check
          %p467 = pneg %p164
        $region34: #{transformer_decoder_fused.1} parent=15 // pred_check_branch
          %469 = sbr.rel (%p467) target = $region36
        $region35: #{transformer_decoder_fused.1} parent=15 // pred_region
          %p470 = scmp.lt.s32.totalorder %s36, 1
          %s471 = scalar_select %p470, %s36, 1
          %s472 = smul.addr %s471, 2
          %s473 = scalar_lea.vmem %s4, %s472
        $region36: #{transformer_decoder_fused.1} parent=15 // pred_fallthru
          _
        // Predicated region
        $region37: #{transformer_decoder_fused.1} parent=15 // pred_check
          %p474 = pneg %p190
        $region38: #{transformer_decoder_fused.1} parent=15 // pred_check_branch
          %476 = sbr.rel (%p474) target = $region40
        $region39: #{transformer_decoder_fused.1} parent=15 // pred_region
          %p477 = scmp.lt.s32.totalorder %s36, 1
          %s478 = scalar_select %p477, %s36, 1
          %s479 = smul.addr %s478, 16
          %s480 = smul.addr %s479, 4
          %s481 = scalar_lea.vmem %s5, %s480
        $region40: #{transformer_decoder_fused.1} parent=15 // pred_fallthru
          _
        // Predicated region
        $region41: #{transformer_decoder_fused.1} parent=15 // pred_check
          %p482 = pneg %p216
        $region42: #{transformer_decoder_fused.1} parent=15 // pred_check_branch
          %484 = sbr.rel (%p482) target = $region44
        $region43: #{transformer_decoder_fused.1} parent=15 // pred_region
          %p485 = scmp.lt.s32.totalorder %s36, 1
          %s486 = scalar_select %p485, %s36, 1
          %s487 = smul.addr %s486, 8
          %s488 = smul.addr %s487, 4
          %s489 = scalar_lea.vmem %s6, %s488
        $region44: #{transformer_decoder_fused.1} parent=15 // pred_fallthru
          _
        // Predicated region
        $region45: #{transformer_decoder_fused.1} parent=15 // pred_check
          %p490 = pneg %p242
        $region46: #{transformer_decoder_fused.1} parent=15 // pred_check_branch
          %492 = sbr.rel (%p490) target = $region48
        $region47: #{transformer_decoder_fused.1} parent=15 // pred_region
          %p493 = scmp.lt.s32.totalorder %s36, 1
          %s494 = scalar_select %p493, %s36, 1
          %s495 = smul.addr %s494, 8
          %s496 = smul.addr %s495, 4
          %s497 = scalar_lea.vmem %s7, %s496
        $region48: #{transformer_decoder_fused.1} parent=15 // pred_fallthru
          _
        // Predicated region
        $region49: #{transformer_decoder_fused.1} parent=15 // pred_check
          %p498 = pneg %p268
        $region50: #{transformer_decoder_fused.1} parent=15 // pred_check_branch
          %500 = sbr.rel (%p498) target = $region52
        $region51: #{transformer_decoder_fused.1} parent=15 // pred_region
          %p501 = scmp.lt.s32.totalorder %s36, 1
          %s502 = scalar_select %p501, %s36, 1
          %s503 = smul.addr %s502, 8
          %s504 = smul.addr %s503, 4
          %s505 = scalar_lea.vmem %s8, %s504
        $region52: #{transformer_decoder_fused.1} parent=15 // pred_fallthru
          _
        // Predicated region
        $region53: #{transformer_decoder_fused.1} parent=15 // pred_check
          %p506 = pneg %p294
        $region54: #{transformer_decoder_fused.1} parent=15 // pred_check_branch
          %508 = sbr.rel (%p506) target = $region56
        $region55: #{transformer_decoder_fused.1} parent=15 // pred_region
          %s509 = sand.u32 %s28, 1
          %s510 = scalar_lea.sflag [#allocation6], %s509
          %s511 = sand.u32 %s284, 1
          %s512 = smul.addr %s511, 32
          %s513 = scalar_lea.vmem [#allocation5], %s512
          %515 = vsyncadd %s510, 0
          %s516 = smul.addr %s36, 8
          %s517 = smul.addr %s516, 4
          %s518 = scalar_lea.hbm %s9, %s517
          %s519 = sshll.u32 %s518, 4
          %s520 = int_to_ptr.hbm [resolvable:$true] %s519
          %s521 = sshll.u32 %s513, 4
          %s522 = int_to_ptr.vmem [resolvable:$true] %s521
          %527 = dma.hbm_to_vmem [thread:$0]  %s520, 512, %s522, %s510, 64, 64, 4
        $region56: #{transformer_decoder_fused.1} parent=15 // pred_fallthru
          _
        // Predicated region
        $region57: #{transformer_decoder_fused.1} parent=15 // pred_check
          %p528 = pneg %p320
        $region58: #{transformer_decoder_fused.1} parent=15 // pred_check_branch
          %530 = sbr.rel (%p528) target = $region60
        $region59: #{transformer_decoder_fused.1} parent=15 // pred_region
          %s531 = sand.u32 %s28, 1
          %s532 = scalar_lea.sflag [#allocation6], %s531
          %s533 = sand.u32 %s310, 1
          %s534 = smul.addr %s533, 32
          %s535 = scalar_lea.vmem [#allocation7], %s534
          %537 = vsyncadd %s532, 0
          %s538 = smul.addr %s36, 8
          %s539 = smul.addr %s538, 4
          %s540 = scalar_lea.hbm %s10, %s539
          %s541 = sshll.u32 %s540, 4
          %s542 = int_to_ptr.hbm [resolvable:$true] %s541
          %s543 = sshll.u32 %s535, 4
          %s544 = int_to_ptr.vmem [resolvable:$true] %s543
          %549 = dma.hbm_to_vmem [thread:$0]  %s542, 512, %s544, %s532, 64, 64, 4
        $region60: #{transformer_decoder_fused.1} parent=15 // pred_fallthru
          _
        // Predicated region
        $region61: #{transformer_decoder_fused.1} parent=15 // pred_check
          %p550 = pneg %p346
        $region62: #{transformer_decoder_fused.1} parent=15 // pred_check_branch
          %552 = sbr.rel (%p550) target = $region64
        $region63: #{transformer_decoder_fused.1} parent=15 // pred_region
          %p553 = scmp.lt.s32.totalorder %s36, 1
          %s554 = scalar_select %p553, %s36, 1
          %s555 = smul.addr %s554, 16
          %s556 = smul.addr %s555, 4
          %s557 = scalar_lea.vmem %s11, %s556
        $region64: #{transformer_decoder_fused.1} parent=15 // pred_fallthru
          _
        // Predicated region
        $region65: #{transformer_decoder_fused.1} parent=15 // pred_check
          %p558 = pneg %p372
        $region66: #{transformer_decoder_fused.1} parent=15 // pred_check_branch
          %560 = sbr.rel (%p558) target = $region68
        $region67: #{transformer_decoder_fused.1} parent=15 // pred_region
          %p561 = scmp.lt.s32.totalorder %s36, 1
          %s562 = scalar_select %p561, %s36, 1
          %s563 = smul.addr %s562, 32
          %s564 = smul.addr %s563, 4
          %s565 = scalar_lea.vmem %s12, %s564
        $region68: #{transformer_decoder_fused.1} parent=15 // pred_fallthru
          _
      $region16: #{transformer_decoder_fused.1} parent=5 // pred_fallthru
        _
      %p566 = scmp.le.s32.totalorder 1, %s28
      %p567 = scmp.lt.s32.totalorder %s28, 5
      %p568 = pnand %p566, %p567
      %p569 = pneg %p568
      // Predicated region
      $region69: #{transformer_decoder_fused.1} parent=5 // pred_check
        _
      $region70: #{transformer_decoder_fused.1} parent=5 // pred_check_branch
        %571 = sbr.rel (%p568) target = $region72
      $region71: #{transformer_decoder_fused.1} parent=5 // pred_region
        %s572 = ssub.s32 %s28, 1
        %s573 = sand.u32 %s53, 1
        %s574 = scalar_lea.sflag [#allocation3], %s573
        %s575 = sand.u32 %s53, 1
        %s576 = smul.addr %s575, 16
        %s577 = scalar_lea.vmem [#allocation2], %s576
        // Predicated region
        $region73: #{transformer_decoder_fused.1} parent=71 // pred_check
          %p578 = pneg %p66
        $region74: #{transformer_decoder_fused.1} parent=71 // pred_check_branch
          %580 = sbr.rel (%p578) target = $region76
        $region75: #{transformer_decoder_fused.1} parent=71 // pred_region
          %582 = dma.done %s574, 256
        $region76: #{transformer_decoder_fused.1} parent=71 // pred_fallthru
          _
        %s583 = sand.u32 %s33, 1
        %s584 = scalar_lea.sflag [#allocation6], %s583
        %s585 = sand.u32 %s287, 1
        %s586 = smul.addr %s585, 32
        %s587 = scalar_lea.vmem [#allocation5], %s586
        // Predicated region
        $region77: #{transformer_decoder_fused.1} parent=71 // pred_check
          %p588 = pneg %p300
        $region78: #{transformer_decoder_fused.1} parent=71 // pred_check_branch
          %590 = sbr.rel (%p588) target = $region80
        $region79: #{transformer_decoder_fused.1} parent=71 // pred_region
          %592 = dma.done %s584, 512
        $region80: #{transformer_decoder_fused.1} parent=71 // pred_fallthru
          _
        %s593 = sand.u32 %s33, 1
        %s594 = scalar_lea.sflag [#allocation6], %s593
        %s595 = sand.u32 %s313, 1
        %s596 = smul.addr %s595, 32
        %s597 = scalar_lea.vmem [#allocation7], %s596
        // Predicated region
        $region81: #{transformer_decoder_fused.1} parent=71 // pred_check
          %p598 = pneg %p326
        $region82: #{transformer_decoder_fused.1} parent=71 // pred_check_branch
          %600 = sbr.rel (%p598) target = $region84
        $region83: #{transformer_decoder_fused.1} parent=71 // pred_region
          %602 = dma.done %s594, 512
        $region84: #{transformer_decoder_fused.1} parent=71 // pred_fallthru
          _
        %s603 = sand.u32 %s53, 1
        %s604 = scalar_lea.sflag [#allocation3], %s603
        %s605 = sand.u32 %s53, 1
        %s606 = smul.addr %s605, 16
        %s607 = scalar_lea.vmem [#allocation2], %s606
        %p608 = pneg %p66
        %p609 = pneg %p63
        %p610 = scmp.lt.s32.totalorder %s37, 1
        %s611 = scalar_select %p610, %s37, 1
        %s612 = smul.addr %s611, 4
        %s613 = smul.addr %s612, 4
        %s614 = scalar_lea.vmem %s1, %s613
        %p615 = pneg %p92
        %p616 = pneg %p89
        %p617 = scmp.lt.s32.totalorder %s38, 1
        %s618 = scalar_select %p617, %s38, 1
        %s619 = smul.addr %s618, 8
        %s620 = scalar_lea.vmem %s2, %s619
        %p621 = pneg %p118
        %p622 = pneg %p115
        %p623 = scmp.lt.s32.totalorder %s38, 1
        %s624 = scalar_select %p623, %s38, 1
        %s625 = smul.addr %s624, 2
        %s626 = scalar_lea.vmem %s3, %s625
        %p627 = pneg %p144
        %p628 = pneg %p141
        %p629 = scmp.lt.s32.totalorder %s38, 1
        %s630 = scalar_select %p629, %s38, 1
        %s631 = smul.addr %s630, 2
        %s632 = scalar_lea.vmem %s4, %s631
        %p633 = pneg %p170
        %p634 = pneg %p167
        %p635 = scmp.lt.s32.totalorder %s38, 1
        %s636 = scalar_select %p635, %s38, 1
        %s637 = smul.addr %s636, 16
        %s638 = smul.addr %s637, 4
        %s639 = scalar_lea.vmem %s5, %s638
        %p640 = pneg %p196
        %p641 = pneg %p193
        %p642 = scmp.lt.s32.totalorder %s38, 1
        %s643 = scalar_select %p642, %s38, 1
        %s644 = smul.addr %s643, 8
        %s645 = smul.addr %s644, 4
        %s646 = scalar_lea.vmem %s6, %s645
        %p647 = pneg %p222
        %p648 = pneg %p219
        %p649 = scmp.lt.s32.totalorder %s38, 1
        %s650 = scalar_select %p649, %s38, 1
        %s651 = smul.addr %s650, 8
        %s652 = smul.addr %s651, 4
        %s653 = scalar_lea.vmem %s7, %s652
        %p654 = pneg %p248
        %p655 = pneg %p245
        %p656 = scmp.lt.s32.totalorder %s38, 1
        %s657 = scalar_select %p656, %s38, 1
        %s658 = smul.addr %s657, 8
        %s659 = smul.addr %s658, 4
        %s660 = scalar_lea.vmem %s8, %s659
        %p661 = pneg %p274
        %p662 = pneg %p271
        %s663 = sand.u32 %s33, 1
        %s664 = scalar_lea.sflag [#allocation6], %s663
        %s665 = sand.u32 %s287, 1
        %s666 = smul.addr %s665, 32
        %s667 = scalar_lea.vmem [#allocation5], %s666
        %p668 = pneg %p300
        %p669 = pneg %p297
        %s670 = sand.u32 %s33, 1
        %s671 = scalar_lea.sflag [#allocation6], %s670
        %s672 = sand.u32 %s313, 1
        %s673 = smul.addr %s672, 32
        %s674 = scalar_lea.vmem [#allocation7], %s673
        %p675 = pneg %p326
        %p676 = pneg %p323
        %p677 = scmp.lt.s32.totalorder %s38, 1
        %s678 = scalar_select %p677, %s38, 1
        %s679 = smul.addr %s678, 16
        %s680 = smul.addr %s679, 4
        %s681 = scalar_lea.vmem %s11, %s680
        %p682 = pneg %p352
        %p683 = pneg %p349
        %p684 = scmp.lt.s32.totalorder %s38, 1
        %s685 = scalar_select %p684, %s38, 1
        %s686 = smul.addr %s685, 32
        %s687 = smul.addr %s686, 4
        %s688 = scalar_lea.vmem %s12, %s687
        %p689 = pneg %p378
        %p690 = pneg %p375
        %p691 = pneg %p404
        %p692 = pneg %p401
        %s693 = sand.u32 %s391, 1
        %s694 = scalar_lea.sflag [#allocation4], %s693
        %s695 = sand.u32 %s391, 1
        %s696 = smul.addr %s695, 16
        %s697 = scalar_lea.vmem [#allocation8], %s696
        %p698 = scmp.lt.s32.totalorder %s37, 1
        %s699 = scalar_select %p698, %s37, 1
        %s700 = smul.addr %s699, 4
        %s701 = smul.addr %s700, 4
        %s702 = scalar_lea.vmem %s1, %s701
        %p703 = scmp.lt.s32.totalorder %s38, 1
        %s704 = scalar_select %p703, %s38, 1
        %s705 = smul.addr %s704, 8
        %s706 = scalar_lea.vmem %s2, %s705
        %p707 = scmp.lt.s32.totalorder %s38, 1
        %s708 = scalar_select %p707, %s38, 1
        %s709 = smul.addr %s708, 2
        %s710 = scalar_lea.vmem %s3, %s709
        %p711 = scmp.lt.s32.totalorder %s38, 1
        %s712 = scalar_select %p711, %s38, 1
        %s713 = smul.addr %s712, 2
        %s714 = scalar_lea.vmem %s4, %s713
        %p715 = scmp.lt.s32.totalorder %s38, 1
        %s716 = scalar_select %p715, %s38, 1
        %s717 = smul.addr %s716, 16
        %s718 = smul.addr %s717, 4
        %s719 = scalar_lea.vmem %s5, %s718
        %p720 = scmp.lt.s32.totalorder %s38, 1
        %s721 = scalar_select %p720, %s38, 1
        %s722 = smul.addr %s721, 8
        %s723 = smul.addr %s722, 4
        %s724 = scalar_lea.vmem %s6, %s723
        %p725 = scmp.lt.s32.totalorder %s38, 1
        %s726 = scalar_select %p725, %s38, 1
        %s727 = smul.addr %s726, 8
        %s728 = smul.addr %s727, 4
        %s729 = scalar_lea.vmem %s7, %s728
        %p730 = scmp.lt.s32.totalorder %s38, 1
        %s731 = scalar_select %p730, %s38, 1
        %s732 = smul.addr %s731, 8
        %s733 = smul.addr %s732, 4
        %s734 = scalar_lea.vmem %s8, %s733
        %p735 = scmp.lt.s32.totalorder %s38, 1
        %s736 = scalar_select %p735, %s38, 1
        %s737 = smul.addr %s736, 16
        %s738 = smul.addr %s737, 4
        %s739 = scalar_lea.vmem %s11, %s738
        %p740 = scmp.lt.s32.totalorder %s38, 1
        %s741 = scalar_select %p740, %s38, 1
        %s742 = smul.addr %s741, 32
        %s743 = smul.addr %s742, 4
        %s744 = scalar_lea.vmem %s12, %s743
        %p746 = scmp.eq.s32.totalorder %s38, 0
        // Predicated region
        $region85: #{transformer_decoder_fused.1} parent=71 // pred_check
          %p747 = pneg %p746
        $region86: #{transformer_decoder_fused.1} parent=71 // pred_check_branch
          %749 = sbr.rel (%p747) target = $region88
        $region87: #{transformer_decoder_fused.1} parent=71 // pred_region
          %v750 = vld [vmem:[%s577] sm:$0xff]
          %v751 = vld [vmem:[%s577 + $0x8] sm:$0xff]
          %vm752 = vcmask 523264
          %753 = vst.msk [vmem:[%s697] sm:$0xff] %vm752, %v750
          %754 = vst.msk [vmem:[%s697 + $0x8] sm:$0xff] %vm752, %v751
        $region88: #{transformer_decoder_fused.1} parent=71 // pred_fallthru
          _
        %v755 = vld [vmem:[%s706] sm:$0x3f]
        %v756 = vld [vmem:[%s710] sm:$0x3]
        %v757 = vld [vmem:[%s714] sm:$0x3]
        %v758 = vld [vmem:[%s697] sm:$0xff]
        %v759 = vld [vmem:[%s697 + $0x8] sm:$0xff]
        %v760 = vld [vmem:[%s702] sm:$0xf]
        %v761 = vld [vmem:[%s702 + $0x4] sm:$0xf]
        %v762 = vld [vmem:[%s702 + $0x8] sm:$0xf]
        %v763 = vld [vmem:[%s702 + $0xc] sm:$0xf]
        %vm764 = vcmask 523264
        %v765 = vsel %vm764, %v758, 0.0
        %766 = vadd.xlane.f32.xlu0 %v765
        %v767 = vpop.xlane.xlu0 %766
        %v768 = vsel %vm764, %v759, 0.0
        %769 = vadd.xlane.f32.xlu0 %v768
        %v770 = vpop.xlane.xlu0 %769
        %v771 = vrcp.pop 64.0
        %v772 = vmul.f32 64.0, %v771
        %v773 = vsub.f32 1.0, %v772
        %v774 = vmul.f32 %v771, %v773
        %v775 = vadd.f32 %v771, %v774
        %vm776 = vweird.f32 %v771
        %v777 = vsel %vm776, %v771, %v775
        %v778 = vmul.f32 %v767, %v777
        %v779 = vmul.f32 %v770, %v777
        %v780 = vsub.f32 %v758, %v778
        %v781 = vsub.f32 %v759, %v779
        %v782 = vmul.f32 %v780, %v780
        %v783 = vmul.f32 %v781, %v781
        %v784 = vsel %vm764, %v782, 0.0
        %785 = vadd.xlane.f32.xlu0 %v784
        %v786 = vpop.xlane.xlu0 %785
        %v787 = vsel %vm764, %v783, 0.0
        %788 = vadd.xlane.f32.xlu0 %v787
        %v789 = vpop.xlane.xlu0 %788
        %v790 = vmul.f32 %v786, %v777
        %v791 = vmul.f32 %v789, %v777
        %v792 = vadd.f32 %v790, 1e-05
        %v793 = vadd.f32 %v791, 1e-05
        %v794 = vrsqrt.pop %v792
        %v795 = vmul.f32 %v794, %v792
        %v796 = vmul.f32 %v795, %v794
        %v797 = vmul.f32 0.5, %v796
        %v798 = vsub.f32 1.5, %v797
        %v799 = vmul.f32 %v794, %v798
        %vm800 = vweird.f32 %v792
        %vm801 = vweird.f32 %v794
        %vm802 = vmor %vm800, %vm801
        %v803 = vsel %vm802, %v794, %v799
        %v804 = vrsqrt.pop %v793
        %v805 = vmul.f32 %v804, %v793
        %v806 = vmul.f32 %v805, %v804
        %v807 = vmul.f32 0.5, %v806
        %v808 = vsub.f32 1.5, %v807
        %v809 = vmul.f32 %v804, %v808
        %vm810 = vweird.f32 %v793
        %vm811 = vweird.f32 %v804
        %vm812 = vmor %vm810, %vm811
        %v813 = vsel %vm812, %v804, %v809
        %v814 = vmul.f32 %v780, %v803
        %v815 = vmul.f32 %v781, %v813
        %v816 = vpack.c.bf16 %v815, %v814
        %v817 = vld [vmem:[%s719] sm:$0xff]
        %v818 = vld [vmem:[%s719 + $0x8] sm:$0xff]
        %v819 = vld [vmem:[%s719 + $0x10] sm:$0xff]
        %v820 = vld [vmem:[%s719 + $0x18] sm:$0xff]
        %v821 = vld [vmem:[%s719 + $0x20] sm:$0xff]
        %v822 = vld [vmem:[%s719 + $0x28] sm:$0xff]
        %v823 = vld [vmem:[%s719 + $0x30] sm:$0xff]
        %v824 = vld [vmem:[%s719 + $0x38] sm:$0xff]
        %v826 = vperm.slane %v756, 0
        %v827 = vperm.slane %v756, 1
        %v838 = vunpack.c.l.b16 %v817
        %v839 = vunpack.c.h.b16 %v817
        %v840 = vunpack.c.l.b16 %v818
        %v841 = vunpack.c.h.b16 %v818
        %v842 = vunpack.c.l.b16 %v819
        %v843 = vunpack.c.h.b16 %v819
        %v844 = vunpack.c.l.b16 %v820
        %v845 = vunpack.c.h.b16 %v820
        %v846 = vunpack.c.l.b16 %v821
        %v847 = vunpack.c.h.b16 %v821
        %v848 = vunpack.c.l.b16 %v822
        %v849 = vunpack.c.h.b16 %v822
        %v850 = vunpack.c.l.b16 %v823
        %v851 = vunpack.c.h.b16 %v823
        %v852 = vunpack.c.l.b16 %v824
        %v853 = vunpack.c.h.b16 %v824
        %v854 = vpack.c.b16 %v840, %v838
        %v855 = vpack.c.b16 %v841, %v839
        %v856 = vpack.c.b16 %v844, %v842
        %v857 = vpack.c.b16 %v845, %v843
        %v858 = vpack.c.b16 %v848, %v846
        %v859 = vpack.c.b16 %v849, %v847
        %v860 = vpack.c.b16 %v852, %v850
        %v861 = vpack.c.b16 %v853, %v851
        %v871 = vsel %vm764, %v816, 0
        %873 = vmatpush.bf16.msra.mxu0 0
        %874 = vmatpush.bf16.msra.mxu0 0
        %875 = vmatpush.bf16.msra.mxu0 0
        %876 = vmatpush.bf16.msra.mxu0 0
        %877 = vmatpush.bf16.msra.mxu0 %v860
        %878 = vmatpush.bf16.msra.mxu0 %v858
        %879 = vmatpush.bf16.msra.mxu0 %v856
        %880 = vmatpush.bf16.msra.mxu0 %v854
        %881 = vmatmul.bf16.gmra.mxu0 %v871
        %v882 = vpop.f32.mrf.mxu0
        %v883 = vadd.f32 %v826, %v882
        %v884 = vpop.f32.mrf.mxu0
        %v885 = vadd.f32 %v826, %v884
        %886 = vdwg.mxu0
        %887 = vmatpush.bf16.msra.mxu0 0
        %888 = vmatpush.bf16.msra.mxu0 0
        %889 = vmatpush.bf16.msra.mxu0 0
        %890 = vmatpush.bf16.msra.mxu0 0
        %891 = vmatpush.bf16.msra.mxu0 %v861
        %892 = vmatpush.bf16.msra.mxu0 %v859
        %893 = vmatpush.bf16.msra.mxu0 %v857
        %894 = vmatpush.bf16.msra.mxu0 %v855
        %895 = vmatmul.bf16.gmra.mxu0 %v871
        %v896 = vpop.f32.mrf.mxu0
        %v897 = vadd.f32 %v827, %v896
        %v898 = vpop.f32.mrf.mxu0
        %v899 = vadd.f32 %v827, %v898
        %900 = vdwg.mxu0
        %903 = vrot.lane.b32.xlu0 %v883, 112
        %v904 = vpop.permute.xlu0 %903
        %905 = vrot.lane.b32.xlu0 %v885, 112
        %v906 = vpop.permute.xlu0 %905
        %909 = vrot.lane.b32.xlu0 %v883, 96
        %v910 = vpop.permute.xlu0 %909
        %911 = vrot.lane.b32.xlu0 %v885, 96
        %v912 = vpop.permute.xlu0 %911
        %915 = vrot.lane.b32.xlu0 %v883, 80
        %v916 = vpop.permute.xlu0 %915
        %917 = vrot.lane.b32.xlu0 %v885, 80
        %v918 = vpop.permute.xlu0 %917
        %v921 = vpack.c.bf16 %v883, %v883
        %v922 = vpack.c.bf16 %v885, %v885
        %v923 = vpack.c.bf16 %v904, %v904
        %v924 = vpack.c.bf16 %v906, %v906
        %v925 = vpack.c.bf16 %v910, %v910
        %v926 = vpack.c.bf16 %v912, %v912
        %v927 = vpack.c.bf16 %v916, %v916
        %v928 = vpack.c.bf16 %v918, %v918
        %931 = vrot.lane.b32.xlu0 %v897, 112
        %v932 = vpop.permute.xlu0 %931
        %933 = vrot.lane.b32.xlu0 %v899, 112
        %v934 = vpop.permute.xlu0 %933
        %937 = vrot.lane.b32.xlu0 %v897, 96
        %v938 = vpop.permute.xlu0 %937
        %939 = vrot.lane.b32.xlu0 %v899, 96
        %v940 = vpop.permute.xlu0 %939
        %943 = vrot.lane.b32.xlu0 %v897, 80
        %v944 = vpop.permute.xlu0 %943
        %945 = vrot.lane.b32.xlu0 %v899, 80
        %v946 = vpop.permute.xlu0 %945
        %v949 = vpack.c.bf16 %v897, %v897
        %v950 = vpack.c.bf16 %v899, %v899
        %v951 = vpack.c.bf16 %v932, %v932
        %v952 = vpack.c.bf16 %v934, %v934
        %v953 = vpack.c.bf16 %v938, %v938
        %v954 = vpack.c.bf16 %v940, %v940
        %v955 = vpack.c.bf16 %v944, %v944
        %v956 = vpack.c.bf16 %v946, %v946
        %v959 = vunpack.c.l.b16 %v921
        %v960 = vunpack.c.l.b16 %v922
        %v961 = vpack.c.b16 %v960, %v959
        %962 = vrot.lane.b32.xlu0 %v961, 64
        %v963 = vpop.permute.xlu0 %962
        %vm964 = vcmask 130048
        %v966 = vsel %vm964, %v961, 0
        %v969 = vsel %vm964, %v963, 0
        %971 = vmatpush.bf16.xpose.msra.mxu0 0
        %972 = vmatpush.bf16.xpose.msra.mxu0 0
        %973 = vmatpush.bf16.xpose.msra.mxu0 0
        %974 = vmatpush.bf16.xpose.msra.mxu0 0
        %975 = vmatpush.bf16.xpose.msra.mxu0 0
        %976 = vmatpush.bf16.xpose.msra.mxu0 0
        %977 = vmatpush.bf16.xpose.msra.mxu0 0
        %978 = vmatpush.bf16.xpose.msra.mxu0 %v969
        %979 = vmatmul.bf16.gmra.mxu0 %v966
        %v980 = vpop.f32.mrf.mxu0
        %v981 = vadd.f32 0.0, %v980
        %v982 = vpop.f32.mrf.mxu0
        %v983 = vadd.f32 0.0, %v982
        %984 = vdwg.mxu0
        %v987 = vunpack.c.l.b16 %v923
        %v988 = vunpack.c.l.b16 %v924
        %v989 = vpack.c.b16 %v988, %v987
        %990 = vrot.lane.b32.xlu0 %v989, 64
        %v991 = vpop.permute.xlu0 %990
        %v993 = vsel %vm964, %v989, 0
        %v996 = vsel %vm964, %v991, 0
        %998 = vmatpush.bf16.xpose.msra.mxu0 0
        %999 = vmatpush.bf16.xpose.msra.mxu0 0
        %1000 = vmatpush.bf16.xpose.msra.mxu0 0
        %1001 = vmatpush.bf16.xpose.msra.mxu0 0
        %1002 = vmatpush.bf16.xpose.msra.mxu0 0
        %1003 = vmatpush.bf16.xpose.msra.mxu0 0
        %1004 = vmatpush.bf16.xpose.msra.mxu0 0
        %1005 = vmatpush.bf16.xpose.msra.mxu0 %v996
        %1006 = vmatmul.bf16.gmra.mxu0 %v993
        %v1007 = vpop.f32.mrf.mxu0
        %v1008 = vadd.f32 0.0, %v1007
        %v1009 = vpop.f32.mrf.mxu0
        %v1010 = vadd.f32 0.0, %v1009
        %1011 = vdwg.mxu0
        %v1014 = vunpack.c.l.b16 %v925
        %v1015 = vunpack.c.l.b16 %v926
        %v1016 = vpack.c.b16 %v1015, %v1014
        %1017 = vrot.lane.b32.xlu0 %v1016, 64
        %v1018 = vpop.permute.xlu0 %1017
        %v1020 = vsel %vm964, %v1016, 0
        %v1023 = vsel %vm964, %v1018, 0
        %1025 = vmatpush.bf16.xpose.msra.mxu0 0
        %1026 = vmatpush.bf16.xpose.msra.mxu0 0
        %1027 = vmatpush.bf16.xpose.msra.mxu0 0
        %1028 = vmatpush.bf16.xpose.msra.mxu0 0
        %1029 = vmatpush.bf16.xpose.msra.mxu0 0
        %1030 = vmatpush.bf16.xpose.msra.mxu0 0
        %1031 = vmatpush.bf16.xpose.msra.mxu0 0
        %1032 = vmatpush.bf16.xpose.msra.mxu0 %v1023
        %1033 = vmatmul.bf16.gmra.mxu0 %v1020
        %v1034 = vpop.f32.mrf.mxu0
        %v1035 = vadd.f32 0.0, %v1034
        %v1036 = vpop.f32.mrf.mxu0
        %v1037 = vadd.f32 0.0, %v1036
        %1038 = vdwg.mxu0
        %v1041 = vunpack.c.l.b16 %v927
        %v1042 = vunpack.c.l.b16 %v928
        %v1043 = vpack.c.b16 %v1042, %v1041
        %1044 = vrot.lane.b32.xlu0 %v1043, 64
        %v1045 = vpop.permute.xlu0 %1044
        %v1047 = vsel %vm964, %v1043, 0
        %v1050 = vsel %vm964, %v1045, 0
        %1052 = vmatpush.bf16.xpose.msra.mxu0 0
        %1053 = vmatpush.bf16.xpose.msra.mxu0 0
        %1054 = vmatpush.bf16.xpose.msra.mxu0 0
        %1055 = vmatpush.bf16.xpose.msra.mxu0 0
        %1056 = vmatpush.bf16.xpose.msra.mxu0 0
        %1057 = vmatpush.bf16.xpose.msra.mxu0 0
        %1058 = vmatpush.bf16.xpose.msra.mxu0 0
        %1059 = vmatpush.bf16.xpose.msra.mxu0 %v1050
        %1060 = vmatmul.bf16.gmra.mxu0 %v1047
        %v1061 = vpop.f32.mrf.mxu0
        %v1062 = vadd.f32 0.0, %v1061
        %v1063 = vpop.f32.mrf.mxu0
        %v1064 = vadd.f32 0.0, %v1063
        %1065 = vdwg.mxu0
        %v1066 = vsel %vm964, %v981, -inf
        %1067 = vmax.xlane.f32.xlu0 %v1066
        %v1068 = vpop.xlane.xlu0 %1067
        %v1069 = vsel %vm964, %v983, -inf
        %1070 = vmax.xlane.f32.xlu0 %v1069
        %v1071 = vpop.xlane.xlu0 %1070
        %v1072 = vsel %vm964, %v1008, -inf
        %1073 = vmax.xlane.f32.xlu0 %v1072
        %v1074 = vpop.xlane.xlu0 %1073
        %v1075 = vsel %vm964, %v1010, -inf
        %1076 = vmax.xlane.f32.xlu0 %v1075
        %v1077 = vpop.xlane.xlu0 %1076
        %v1078 = vsel %vm964, %v1035, -inf
        %1079 = vmax.xlane.f32.xlu0 %v1078
        %v1080 = vpop.xlane.xlu0 %1079
        %v1081 = vsel %vm964, %v1037, -inf
        %1082 = vmax.xlane.f32.xlu0 %v1081
        %v1083 = vpop.xlane.xlu0 %1082
        %v1084 = vsel %vm964, %v1062, -inf
        %1085 = vmax.xlane.f32.xlu0 %v1084
        %v1086 = vpop.xlane.xlu0 %1085
        %v1087 = vsel %vm964, %v1064, -inf
        %1088 = vmax.xlane.f32.xlu0 %v1087
        %v1089 = vpop.xlane.xlu0 %1088
        %v1090 = vsub.f32 %v981, %v1068
        %v1091 = vsub.f32 %v983, %v1071
        %v1092 = vsub.f32 %v1008, %v1074
        %v1093 = vsub.f32 %v1010, %v1077
        %v1094 = vsub.f32 %v1035, %v1080
        %v1095 = vsub.f32 %v1037, %v1083
        %v1096 = vsub.f32 %v1062, %v1086
        %v1097 = vsub.f32 %v1064, %v1089
        %v1098 = vmul.f32 %v1090, 1.442695
        %v1099 = vpow.pop %v1098
        %v1100 = vmul.f32 %v1091, 1.442695
        %v1101 = vpow.pop %v1100
        %v1102 = vmul.f32 %v1092, 1.442695
        %v1103 = vpow.pop %v1102
        %v1104 = vmul.f32 %v1093, 1.442695
        %v1105 = vpow.pop %v1104
        %v1106 = vmul.f32 %v1094, 1.442695
        %v1107 = vpow.pop %v1106
        %v1108 = vmul.f32 %v1095, 1.442695
        %v1109 = vpow.pop %v1108
        %v1110 = vmul.f32 %v1096, 1.442695
        %v1111 = vpow.pop %v1110
        %v1112 = vmul.f32 %v1097, 1.442695
        %v1113 = vpow.pop %v1112
        %v1114 = vsel %vm964, %v1099, 0.0
        %1115 = vadd.xlane.f32.xlu0 %v1114
        %v1116 = vpop.xlane.xlu0 %1115
        %v1117 = vsel %vm964, %v1101, 0.0
        %1118 = vadd.xlane.f32.xlu0 %v1117
        %v1119 = vpop.xlane.xlu0 %1118
        %v1120 = vsel %vm964, %v1103, 0.0
        %1121 = vadd.xlane.f32.xlu0 %v1120
        %v1122 = vpop.xlane.xlu0 %1121
        %v1123 = vsel %vm964, %v1105, 0.0
        %1124 = vadd.xlane.f32.xlu0 %v1123
        %v1125 = vpop.xlane.xlu0 %1124
        %v1126 = vsel %vm964, %v1107, 0.0
        %1127 = vadd.xlane.f32.xlu0 %v1126
        %v1128 = vpop.xlane.xlu0 %1127
        %v1129 = vsel %vm964, %v1109, 0.0
        %1130 = vadd.xlane.f32.xlu0 %v1129
        %v1131 = vpop.xlane.xlu0 %1130
        %v1132 = vsel %vm964, %v1111, 0.0
        %1133 = vadd.xlane.f32.xlu0 %v1132
        %v1134 = vpop.xlane.xlu0 %1133
        %v1135 = vsel %vm964, %v1113, 0.0
        %1136 = vadd.xlane.f32.xlu0 %v1135
        %v1137 = vpop.xlane.xlu0 %1136
        %v1138 = vrcp.pop %v1116
        %v1139 = vrcp.pop %v1119
        %v1140 = vrcp.pop %v1122
        %v1141 = vrcp.pop %v1125
        %v1142 = vrcp.pop %v1128
        %v1143 = vrcp.pop %v1131
        %v1144 = vrcp.pop %v1134
        %v1145 = vrcp.pop %v1137
        %v1146 = vmul.f32 %v1099, %v1138
        %v1147 = vmul.f32 %v1101, %v1139
        %v1148 = vmul.f32 %v1103, %v1140
        %v1149 = vmul.f32 %v1105, %v1141
        %v1150 = vmul.f32 %v1107, %v1142
        %v1151 = vmul.f32 %v1109, %v1143
        %v1152 = vmul.f32 %v1111, %v1144
        %v1153 = vmul.f32 %v1113, %v1145
        %v1154 = vpack.c.bf16 %v1146, %v1146
        %v1155 = vpack.c.bf16 %v1147, %v1147
        %v1156 = vpack.c.bf16 %v1148, %v1148
        %v1157 = vpack.c.bf16 %v1149, %v1149
        %v1158 = vpack.c.bf16 %v1150, %v1150
        %v1159 = vpack.c.bf16 %v1151, %v1151
        %v1160 = vpack.c.bf16 %v1152, %v1152
        %v1161 = vpack.c.bf16 %v1153, %v1153
        %v1164 = vunpack.c.l.b16 %v1154
        %v1165 = vunpack.c.l.b16 %v1155
        %v1166 = vpack.c.b16 %v1165, %v1164
        %v1169 = vunpack.c.l.b16 %v949
        %v1170 = vunpack.c.l.b16 %v950
        %v1171 = vpack.c.b16 %v1170, %v1169
        %v1174 = vsel %vm964, %v1166, 0
        %1176 = vmatpush.bf16.msra.mxu0 0
        %1177 = vmatpush.bf16.msra.mxu0 0
        %1178 = vmatpush.bf16.msra.mxu0 0
        %1179 = vmatpush.bf16.msra.mxu0 0
        %1180 = vmatpush.bf16.msra.mxu0 0
        %1181 = vmatpush.bf16.msra.mxu0 0
        %1182 = vmatpush.bf16.msra.mxu0 0
        %1183 = vmatpush.bf16.msra.mxu0 %v1171
        %1184 = vmatmul.bf16.gmra.mxu0 %v1174
        %v1185 = vpop.f32.mrf.mxu0
        %v1186 = vadd.f32 0.0, %v1185
        %v1187 = vpop.f32.mrf.mxu0
        %v1188 = vadd.f32 0.0, %v1187
        %1189 = vdwg.mxu0
        %v1192 = vunpack.c.l.b16 %v1156
        %v1193 = vunpack.c.l.b16 %v1157
        %v1194 = vpack.c.b16 %v1193, %v1192
        %v1197 = vunpack.c.l.b16 %v951
        %v1198 = vunpack.c.l.b16 %v952
        %v1199 = vpack.c.b16 %v1198, %v1197
        %v1202 = vsel %vm964, %v1194, 0
        %1204 = vmatpush.bf16.msra.mxu0 0
        %1205 = vmatpush.bf16.msra.mxu0 0
        %1206 = vmatpush.bf16.msra.mxu0 0
        %1207 = vmatpush.bf16.msra.mxu0 0
        %1208 = vmatpush.bf16.msra.mxu0 0
        %1209 = vmatpush.bf16.msra.mxu0 0
        %1210 = vmatpush.bf16.msra.mxu0 0
        %1211 = vmatpush.bf16.msra.mxu0 %v1199
        %1212 = vmatmul.bf16.gmra.mxu0 %v1202
        %v1213 = vpop.f32.mrf.mxu0
        %v1214 = vadd.f32 0.0, %v1213
        %v1215 = vpop.f32.mrf.mxu0
        %v1216 = vadd.f32 0.0, %v1215
        %1217 = vdwg.mxu0
        %v1220 = vunpack.c.l.b16 %v1158
        %v1221 = vunpack.c.l.b16 %v1159
        %v1222 = vpack.c.b16 %v1221, %v1220
        %v1225 = vunpack.c.l.b16 %v953
        %v1226 = vunpack.c.l.b16 %v954
        %v1227 = vpack.c.b16 %v1226, %v1225
        %v1230 = vsel %vm964, %v1222, 0
        %1232 = vmatpush.bf16.msra.mxu0 0
        %1233 = vmatpush.bf16.msra.mxu0 0
        %1234 = vmatpush.bf16.msra.mxu0 0
        %1235 = vmatpush.bf16.msra.mxu0 0
        %1236 = vmatpush.bf16.msra.mxu0 0
        %1237 = vmatpush.bf16.msra.mxu0 0
        %1238 = vmatpush.bf16.msra.mxu0 0
        %1239 = vmatpush.bf16.msra.mxu0 %v1227
        %1240 = vmatmul.bf16.gmra.mxu0 %v1230
        %v1241 = vpop.f32.mrf.mxu0
        %v1242 = vadd.f32 0.0, %v1241
        %v1243 = vpop.f32.mrf.mxu0
        %v1244 = vadd.f32 0.0, %v1243
        %1245 = vdwg.mxu0
        %v1248 = vunpack.c.l.b16 %v1160
        %v1249 = vunpack.c.l.b16 %v1161
        %v1250 = vpack.c.b16 %v1249, %v1248
        %v1253 = vunpack.c.l.b16 %v955
        %v1254 = vunpack.c.l.b16 %v956
        %v1255 = vpack.c.b16 %v1254, %v1253
        %v1258 = vsel %vm964, %v1250, 0
        %1260 = vmatpush.bf16.msra.mxu0 0
        %1261 = vmatpush.bf16.msra.mxu0 0
        %1262 = vmatpush.bf16.msra.mxu0 0
        %1263 = vmatpush.bf16.msra.mxu0 0
        %1264 = vmatpush.bf16.msra.mxu0 0
        %1265 = vmatpush.bf16.msra.mxu0 0
        %1266 = vmatpush.bf16.msra.mxu0 0
        %1267 = vmatpush.bf16.msra.mxu0 %v1255
        %1268 = vmatmul.bf16.gmra.mxu0 %v1258
        %v1269 = vpop.f32.mrf.mxu0
        %v1270 = vadd.f32 0.0, %v1269
        %v1271 = vpop.f32.mrf.mxu0
        %v1272 = vadd.f32 0.0, %v1271
        %1273 = vdwg.mxu0
        %1276 = vrot.lane.b32.xlu0 %v1214, 16
        %v1277 = vpop.permute.xlu0 %1276
        %1278 = vrot.lane.b32.xlu0 %v1216, 16
        %v1279 = vpop.permute.xlu0 %1278
        %1284 = vrot.lane.b32.xlu0 %v1242, 32
        %v1285 = vpop.permute.xlu0 %1284
        %1286 = vrot.lane.b32.xlu0 %v1244, 32
        %v1287 = vpop.permute.xlu0 %1286
        %1292 = vrot.lane.b32.xlu0 %v1270, 48
        %v1293 = vpop.permute.xlu0 %1292
        %1294 = vrot.lane.b32.xlu0 %v1272, 48
        %v1295 = vpop.permute.xlu0 %1294
        %v1298 = vsel %vm964, %v1186, %v1277
        %v1299 = vsel %vm964, %v1188, %v1279
        %vm1300 = vcmask 261120
        %v1301 = vsel %vm1300, %v1298, %v1285
        %v1302 = vsel %vm1300, %v1299, %v1287
        %vm1303 = vcmask 392192
        %v1304 = vsel %vm1303, %v1301, %v1293
        %v1305 = vsel %vm1303, %v1302, %v1295
        %v1306 = vpack.c.bf16 %v1305, %v1304
        %v1307 = vld [vmem:[%s724] sm:$0xf]
        %v1308 = vld [vmem:[%s724 + $0x4] sm:$0xf]
        %v1309 = vld [vmem:[%s724 + $0x8] sm:$0xf]
        %v1310 = vld [vmem:[%s724 + $0xc] sm:$0xf]
        %v1311 = vld [vmem:[%s724 + $0x10] sm:$0xf]
        %v1312 = vld [vmem:[%s724 + $0x14] sm:$0xf]
        %v1313 = vld [vmem:[%s724 + $0x18] sm:$0xf]
        %v1314 = vld [vmem:[%s724 + $0x1c] sm:$0xf]
        %v1315 = vperm.slane %v755, 0
        %v1324 = vunpack.c.l.b16 %v1307
        %v1325 = vunpack.c.l.b16 %v1308
        %v1326 = vunpack.c.l.b16 %v1309
        %v1327 = vunpack.c.l.b16 %v1310
        %v1328 = vunpack.c.l.b16 %v1311
        %v1329 = vunpack.c.l.b16 %v1312
        %v1330 = vunpack.c.l.b16 %v1313
        %v1331 = vunpack.c.l.b16 %v1314
        %v1332 = vpack.c.b16 %v1325, %v1324
        %v1333 = vpack.c.b16 %v1327, %v1326
        %v1334 = vpack.c.b16 %v1329, %v1328
        %v1335 = vpack.c.b16 %v1331, %v1330
        %v1341 = vsel %vm764, %v1306, 0
        %1343 = vmatpush.bf16.msra.mxu0 0
        %1344 = vmatpush.bf16.msra.mxu0 0
        %1345 = vmatpush.bf16.msra.mxu0 0
        %1346 = vmatpush.bf16.msra.mxu0 0
        %1347 = vmatpush.bf16.msra.mxu0 %v1335
        %1348 = vmatpush.bf16.msra.mxu0 %v1334
        %1349 = vmatpush.bf16.msra.mxu0 %v1333
        %1350 = vmatpush.bf16.msra.mxu0 %v1332
        %1351 = vmatmul.bf16.gmra.mxu0 %v1341
        %v1352 = vpop.f32.mrf.mxu0
        %v1353 = vadd.f32 %v1315, %v1352
        %v1354 = vpop.f32.mrf.mxu0
        %v1355 = vadd.f32 %v1315, %v1354
        %1356 = vdwg.mxu0
        %v1357 = vadd.f32 %v758, %v1353
        %v1358 = vadd.f32 %v759, %v1355
        %v1359 = vsel %vm764, %v1357, 0.0
        %1360 = vadd.xlane.f32.xlu0 %v1359
        %v1361 = vpop.xlane.xlu0 %1360
        %v1362 = vsel %vm764, %v1358, 0.0
        %1363 = vadd.xlane.f32.xlu0 %v1362
        %v1364 = vpop.xlane.xlu0 %1363
        %v1365 = vmul.f32 %v1361, %v777
        %v1366 = vmul.f32 %v1364, %v777
        %v1367 = vsub.f32 %v1357, %v1365
        %v1368 = vsub.f32 %v1358, %v1366
        %v1369 = vmul.f32 %v1367, %v1367
        %v1370 = vmul.f32 %v1368, %v1368
        %v1371 = vsel %vm764, %v1369, 0.0
        %1372 = vadd.xlane.f32.xlu0 %v1371
        %v1373 = vpop.xlane.xlu0 %1372
        %v1374 = vsel %vm764, %v1370, 0.0
        %1375 = vadd.xlane.f32.xlu0 %v1374
        %v1376 = vpop.xlane.xlu0 %1375
        %v1377 = vmul.f32 %v1373, %v777
        %v1378 = vmul.f32 %v1376, %v777
        %v1379 = vadd.f32 %v1377, 1e-05
        %v1380 = vadd.f32 %v1378, 1e-05
        %v1381 = vrsqrt.pop %v1379
        %v1382 = vmul.f32 %v1381, %v1379
        %v1383 = vmul.f32 %v1382, %v1381
        %v1384 = vmul.f32 0.5, %v1383
        %v1385 = vsub.f32 1.5, %v1384
        %v1386 = vmul.f32 %v1381, %v1385
        %vm1387 = vweird.f32 %v1379
        %vm1388 = vweird.f32 %v1381
        %vm1389 = vmor %vm1387, %vm1388
        %v1390 = vsel %vm1389, %v1381, %v1386
        %v1391 = vrsqrt.pop %v1380
        %v1392 = vmul.f32 %v1391, %v1380
        %v1393 = vmul.f32 %v1392, %v1391
        %v1394 = vmul.f32 0.5, %v1393
        %v1395 = vsub.f32 1.5, %v1394
        %v1396 = vmul.f32 %v1391, %v1395
        %vm1397 = vweird.f32 %v1380
        %vm1398 = vweird.f32 %v1391
        %vm1399 = vmor %vm1397, %vm1398
        %v1400 = vsel %vm1399, %v1391, %v1396
        %v1401 = vmul.f32 %v1367, %v1390
        %v1402 = vmul.f32 %v1368, %v1400
        %v1403 = vpack.c.bf16 %v1402, %v1401
        %v1404 = vld [vmem:[%s729] sm:$0xf]
        %v1405 = vld [vmem:[%s729 + $0x4] sm:$0xf]
        %v1406 = vld [vmem:[%s729 + $0x8] sm:$0xf]
        %v1407 = vld [vmem:[%s729 + $0xc] sm:$0xf]
        %v1408 = vld [vmem:[%s729 + $0x10] sm:$0xf]
        %v1409 = vld [vmem:[%s729 + $0x14] sm:$0xf]
        %v1410 = vld [vmem:[%s729 + $0x18] sm:$0xf]
        %v1411 = vld [vmem:[%s729 + $0x1c] sm:$0xf]
        %v1412 = vperm.slane %v755, 1
        %v1421 = vunpack.c.l.b16 %v1404
        %v1422 = vunpack.c.l.b16 %v1405
        %v1423 = vunpack.c.l.b16 %v1406
        %v1424 = vunpack.c.l.b16 %v1407
        %v1425 = vunpack.c.l.b16 %v1408
        %v1426 = vunpack.c.l.b16 %v1409
        %v1427 = vunpack.c.l.b16 %v1410
        %v1428 = vunpack.c.l.b16 %v1411
        %v1429 = vpack.c.b16 %v1422, %v1421
        %v1430 = vpack.c.b16 %v1424, %v1423
        %v1431 = vpack.c.b16 %v1426, %v1425
        %v1432 = vpack.c.b16 %v1428, %v1427
        %v1438 = vsel %vm764, %v1403, 0
        %1440 = vmatpush.bf16.msra.mxu0 0
        %1441 = vmatpush.bf16.msra.mxu0 0
        %1442 = vmatpush.bf16.msra.mxu0 0
        %1443 = vmatpush.bf16.msra.mxu0 0
        %1444 = vmatpush.bf16.msra.mxu0 %v1432
        %1445 = vmatpush.bf16.msra.mxu0 %v1431
        %1446 = vmatpush.bf16.msra.mxu0 %v1430
        %1447 = vmatpush.bf16.msra.mxu0 %v1429
        %1448 = vmatmul.bf16.gmra.mxu0 %v1438
        %v1449 = vpop.f32.mrf.mxu0
        %v1450 = vadd.f32 %v1412, %v1449
        %v1451 = vpop.f32.mrf.mxu0
        %v1452 = vadd.f32 %v1412, %v1451
        %1453 = vdwg.mxu0
        %v1454 = vld [vmem:[%s734] sm:$0xf]
        %v1455 = vld [vmem:[%s734 + $0x4] sm:$0xf]
        %v1456 = vld [vmem:[%s734 + $0x8] sm:$0xf]
        %v1457 = vld [vmem:[%s734 + $0xc] sm:$0xf]
        %v1458 = vld [vmem:[%s734 + $0x10] sm:$0xf]
        %v1459 = vld [vmem:[%s734 + $0x14] sm:$0xf]
        %v1460 = vld [vmem:[%s734 + $0x18] sm:$0xf]
        %v1461 = vld [vmem:[%s734 + $0x1c] sm:$0xf]
        %v1462 = vperm.slane %v755, 2
        %v1467 = vunpack.c.l.b16 %v760
        %v1468 = vunpack.c.l.b16 %v761
        %v1469 = vunpack.c.l.b16 %v762
        %v1470 = vunpack.c.l.b16 %v763
        %v1471 = vpack.c.b16 %v1468, %v1467
        %v1472 = vpack.c.b16 %v1470, %v1469
        %v1481 = vunpack.c.l.b16 %v1454
        %v1482 = vunpack.c.l.b16 %v1455
        %v1483 = vunpack.c.l.b16 %v1456
        %v1484 = vunpack.c.l.b16 %v1457
        %v1485 = vunpack.c.l.b16 %v1458
        %v1486 = vunpack.c.l.b16 %v1459
        %v1487 = vunpack.c.l.b16 %v1460
        %v1488 = vunpack.c.l.b16 %v1461
        %v1489 = vpack.c.b16 %v1482, %v1481
        %v1490 = vpack.c.b16 %v1484, %v1483
        %v1491 = vpack.c.b16 %v1486, %v1485
        %v1492 = vpack.c.b16 %v1488, %v1487
        %v1498 = vsel %vm764, %v1471, 0
        %v1501 = vsel %vm764, %v1472, 0
        %1503 = vmatpush.bf16.msra.mxu0 0
        %1504 = vmatpush.bf16.msra.mxu0 0
        %1505 = vmatpush.bf16.msra.mxu0 0
        %1506 = vmatpush.bf16.msra.mxu0 0
        %1507 = vmatpush.bf16.msra.mxu0 %v1492
        %1508 = vmatpush.bf16.msra.mxu0 %v1491
        %1509 = vmatpush.bf16.msra.mxu0 %v1490
        %1510 = vmatpush.bf16.msra.mxu0 %v1489
        %1511 = vmatmul.bf16.gmra.mxu0 %v1498
        %v1512 = vpop.f32.mrf.mxu0
        %v1513 = vadd.f32 %v1462, %v1512
        %v1514 = vpop.f32.mrf.mxu0
        %v1515 = vadd.f32 %v1462, %v1514
        %1516 = vmatmul.bf16.gmra.mxu0 %v1501
        %v1517 = vpop.f32.mrf.mxu0
        %v1518 = vadd.f32 %v1462, %v1517
        %v1519 = vpop.f32.mrf.mxu0
        %v1520 = vadd.f32 %v1462, %v1519
        %1521 = vdwg.mxu0
        %v1522 = vld [vmem:[%s587] sm:$0xf]
        %v1523 = vld [vmem:[%s587 + $0x4] sm:$0xf]
        %v1524 = vld [vmem:[%s587 + $0x8] sm:$0xf]
        %v1525 = vld [vmem:[%s587 + $0xc] sm:$0xf]
        %v1526 = vld [vmem:[%s587 + $0x10] sm:$0xf]
        %v1527 = vld [vmem:[%s587 + $0x14] sm:$0xf]
        %v1528 = vld [vmem:[%s587 + $0x18] sm:$0xf]
        %v1529 = vld [vmem:[%s587 + $0x1c] sm:$0xf]
        %v1530 = vperm.slane %v755, 3
        %v1539 = vunpack.c.l.b16 %v1522
        %v1540 = vunpack.c.l.b16 %v1523
        %v1541 = vunpack.c.l.b16 %v1524
        %v1542 = vunpack.c.l.b16 %v1525
        %v1543 = vunpack.c.l.b16 %v1526
        %v1544 = vunpack.c.l.b16 %v1527
        %v1545 = vunpack.c.l.b16 %v1528
        %v1546 = vunpack.c.l.b16 %v1529
        %v1547 = vpack.c.b16 %v1540, %v1539
        %v1548 = vpack.c.b16 %v1542, %v1541
        %v1549 = vpack.c.b16 %v1544, %v1543
        %v1550 = vpack.c.b16 %v1546, %v1545
        %1555 = vmatpush.bf16.msra.mxu0 0
        %1556 = vmatpush.bf16.msra.mxu0 0
        %1557 = vmatpush.bf16.msra.mxu0 0
        %1558 = vmatpush.bf16.msra.mxu0 0
        %1559 = vmatpush.bf16.msra.mxu0 %v1550
        %1560 = vmatpush.bf16.msra.mxu0 %v1549
        %1561 = vmatpush.bf16.msra.mxu0 %v1548
        %1562 = vmatpush.bf16.msra.mxu0 %v1547
        %1563 = vmatmul.bf16.gmra.mxu0 %v1498
        %v1564 = vpop.f32.mrf.mxu0
        %v1565 = vadd.f32 %v1530, %v1564
        %v1566 = vpop.f32.mrf.mxu0
        %v1567 = vadd.f32 %v1530, %v1566
        %1568 = vmatmul.bf16.gmra.mxu0 %v1501
        %v1569 = vpop.f32.mrf.mxu0
        %v1570 = vadd.f32 %v1530, %v1569
        %v1571 = vpop.f32.mrf.mxu0
        %v1572 = vadd.f32 %v1530, %v1571
        %1573 = vdwg.mxu0
        %1576 = vrot.lane.b32.xlu0 %v1450, 112
        %v1577 = vpop.permute.xlu0 %1576
        %1578 = vrot.lane.b32.xlu0 %v1452, 112
        %v1579 = vpop.permute.xlu0 %1578
        %1582 = vrot.lane.b32.xlu0 %v1450, 96
        %v1583 = vpop.permute.xlu0 %1582
        %1584 = vrot.lane.b32.xlu0 %v1452, 96
        %v1585 = vpop.permute.xlu0 %1584
        %1588 = vrot.lane.b32.xlu0 %v1450, 80
        %v1589 = vpop.permute.xlu0 %1588
        %1590 = vrot.lane.b32.xlu0 %v1452, 80
        %v1591 = vpop.permute.xlu0 %1590
        %v1594 = vpack.c.bf16 %v1450, %v1450
        %v1595 = vpack.c.bf16 %v1452, %v1452
        %v1596 = vpack.c.bf16 %v1577, %v1577
        %v1597 = vpack.c.bf16 %v1579, %v1579
        %v1598 = vpack.c.bf16 %v1583, %v1583
        %v1599 = vpack.c.bf16 %v1585, %v1585
        %v1600 = vpack.c.bf16 %v1589, %v1589
        %v1601 = vpack.c.bf16 %v1591, %v1591
        %1606 = vrot.lane.b32.xlu0 %v1513, 112
        %v1607 = vpop.permute.xlu0 %1606
        %1608 = vrot.lane.b32.xlu0 %v1515, 112
        %v1609 = vpop.permute.xlu0 %1608
        %1610 = vrot.lane.b32.xlu0 %v1518, 112
        %v1611 = vpop.permute.xlu0 %1610
        %1612 = vrot.lane.b32.xlu0 %v1520, 112
        %v1613 = vpop.permute.xlu0 %1612
        %1618 = vrot.lane.b32.xlu0 %v1513, 96
        %v1619 = vpop.permute.xlu0 %1618
        %1620 = vrot.lane.b32.xlu0 %v1515, 96
        %v1621 = vpop.permute.xlu0 %1620
        %1622 = vrot.lane.b32.xlu0 %v1518, 96
        %v1623 = vpop.permute.xlu0 %1622
        %1624 = vrot.lane.b32.xlu0 %v1520, 96
        %v1625 = vpop.permute.xlu0 %1624
        %1630 = vrot.lane.b32.xlu0 %v1513, 80
        %v1631 = vpop.permute.xlu0 %1630
        %1632 = vrot.lane.b32.xlu0 %v1515, 80
        %v1633 = vpop.permute.xlu0 %1632
        %1634 = vrot.lane.b32.xlu0 %v1518, 80
        %v1635 = vpop.permute.xlu0 %1634
        %1636 = vrot.lane.b32.xlu0 %v1520, 80
        %v1637 = vpop.permute.xlu0 %1636
        %v1642 = vpack.c.bf16 %v1513, %v1513
        %v1643 = vpack.c.bf16 %v1515, %v1515
        %v1644 = vpack.c.bf16 %v1518, %v1518
        %v1645 = vpack.c.bf16 %v1520, %v1520
        %v1646 = vpack.c.bf16 %v1607, %v1607
        %v1647 = vpack.c.bf16 %v1609, %v1609
        %v1648 = vpack.c.bf16 %v1611, %v1611
        %v1649 = vpack.c.bf16 %v1613, %v1613
        %v1650 = vpack.c.bf16 %v1619, %v1619
        %v1651 = vpack.c.bf16 %v1621, %v1621
        %v1652 = vpack.c.bf16 %v1623, %v1623
        %v1653 = vpack.c.bf16 %v1625, %v1625
        %v1654 = vpack.c.bf16 %v1631, %v1631
        %v1655 = vpack.c.bf16 %v1633, %v1633
        %v1656 = vpack.c.bf16 %v1635, %v1635
        %v1657 = vpack.c.bf16 %v1637, %v1637
        %1662 = vrot.lane.b32.xlu0 %v1565, 112
        %v1663 = vpop.permute.xlu0 %1662
        %1664 = vrot.lane.b32.xlu0 %v1567, 112
        %v1665 = vpop.permute.xlu0 %1664
        %1666 = vrot.lane.b32.xlu0 %v1570, 112
        %v1667 = vpop.permute.xlu0 %1666
        %1668 = vrot.lane.b32.xlu0 %v1572, 112
        %v1669 = vpop.permute.xlu0 %1668
        %1674 = vrot.lane.b32.xlu0 %v1565, 96
        %v1675 = vpop.permute.xlu0 %1674
        %1676 = vrot.lane.b32.xlu0 %v1567, 96
        %v1677 = vpop.permute.xlu0 %1676
        %1678 = vrot.lane.b32.xlu0 %v1570, 96
        %v1679 = vpop.permute.xlu0 %1678
        %1680 = vrot.lane.b32.xlu0 %v1572, 96
        %v1681 = vpop.permute.xlu0 %1680
        %1686 = vrot.lane.b32.xlu0 %v1565, 80
        %v1687 = vpop.permute.xlu0 %1686
        %1688 = vrot.lane.b32.xlu0 %v1567, 80
        %v1689 = vpop.permute.xlu0 %1688
        %1690 = vrot.lane.b32.xlu0 %v1570, 80
        %v1691 = vpop.permute.xlu0 %1690
        %1692 = vrot.lane.b32.xlu0 %v1572, 80
        %v1693 = vpop.permute.xlu0 %1692
        %v1698 = vpack.c.bf16 %v1565, %v1565
        %v1699 = vpack.c.bf16 %v1567, %v1567
        %v1700 = vpack.c.bf16 %v1570, %v1570
        %v1701 = vpack.c.bf16 %v1572, %v1572
        %v1702 = vpack.c.bf16 %v1663, %v1663
        %v1703 = vpack.c.bf16 %v1665, %v1665
        %v1704 = vpack.c.bf16 %v1667, %v1667
        %v1705 = vpack.c.bf16 %v1669, %v1669
        %v1706 = vpack.c.bf16 %v1675, %v1675
        %v1707 = vpack.c.bf16 %v1677, %v1677
        %v1708 = vpack.c.bf16 %v1679, %v1679
        %v1709 = vpack.c.bf16 %v1681, %v1681
        %v1710 = vpack.c.bf16 %v1687, %v1687
        %v1711 = vpack.c.bf16 %v1689, %v1689
        %v1712 = vpack.c.bf16 %v1691, %v1691
        %v1713 = vpack.c.bf16 %v1693, %v1693
        %v1716 = vunpack.c.l.b16 %v1594
        %v1717 = vunpack.c.l.b16 %v1595
        %v1718 = vpack.c.b16 %v1717, %v1716
        %v1723 = vunpack.c.l.b16 %v1642
        %v1724 = vunpack.c.l.b16 %v1643
        %v1725 = vunpack.c.l.b16 %v1644
        %v1726 = vunpack.c.l.b16 %v1645
        %v1727 = vpack.c.b16 %v1724, %v1723
        %v1728 = vpack.c.b16 %v1726, %v1725
        %v1730 = vsel %vm964, %v1718, 0
        %v1733 = vsel %vm964, %v1727, 0
        %v1736 = vsel %vm964, %v1728, 0
        %1738 = vmatpush.bf16.xpose.msra.mxu0 0
        %1739 = vmatpush.bf16.xpose.msra.mxu0 0
        %1740 = vmatpush.bf16.xpose.msra.mxu0 0
        %1741 = vmatpush.bf16.xpose.msra.mxu0 0
        %1742 = vmatpush.bf16.xpose.msra.mxu0 0
        %1743 = vmatpush.bf16.xpose.msra.mxu0 0
        %1744 = vmatpush.bf16.xpose.msra.mxu0 %v1736
        %1745 = vmatpush.bf16.xpose.msra.mxu0 %v1733
        %1746 = vmatmul.bf16.gmra.mxu0 %v1730
        %v1747 = vpop.f32.mrf.mxu0
        %v1748 = vadd.f32 0.0, %v1747
        %v1749 = vpop.f32.mrf.mxu0
        %v1750 = vadd.f32 0.0, %v1749
        %1751 = vdwg.mxu0
        %v1754 = vunpack.c.l.b16 %v1596
        %v1755 = vunpack.c.l.b16 %v1597
        %v1756 = vpack.c.b16 %v1755, %v1754
        %v1761 = vunpack.c.l.b16 %v1646
        %v1762 = vunpack.c.l.b16 %v1647
        %v1763 = vunpack.c.l.b16 %v1648
        %v1764 = vunpack.c.l.b16 %v1649
        %v1765 = vpack.c.b16 %v1762, %v1761
        %v1766 = vpack.c.b16 %v1764, %v1763
        %v1768 = vsel %vm964, %v1756, 0
        %v1771 = vsel %vm964, %v1765, 0
        %v1774 = vsel %vm964, %v1766, 0
        %1776 = vmatpush.bf16.xpose.msra.mxu0 0
        %1777 = vmatpush.bf16.xpose.msra.mxu0 0
        %1778 = vmatpush.bf16.xpose.msra.mxu0 0
        %1779 = vmatpush.bf16.xpose.msra.mxu0 0
        %1780 = vmatpush.bf16.xpose.msra.mxu0 0
        %1781 = vmatpush.bf16.xpose.msra.mxu0 0
        %1782 = vmatpush.bf16.xpose.msra.mxu0 %v1774
        %1783 = vmatpush.bf16.xpose.msra.mxu0 %v1771
        %1784 = vmatmul.bf16.gmra.mxu0 %v1768
        %v1785 = vpop.f32.mrf.mxu0
        %v1786 = vadd.f32 0.0, %v1785
        %v1787 = vpop.f32.mrf.mxu0
        %v1788 = vadd.f32 0.0, %v1787
        %1789 = vdwg.mxu0
        %v1792 = vunpack.c.l.b16 %v1598
        %v1793 = vunpack.c.l.b16 %v1599
        %v1794 = vpack.c.b16 %v1793, %v1792
        %v1799 = vunpack.c.l.b16 %v1650
        %v1800 = vunpack.c.l.b16 %v1651
        %v1801 = vunpack.c.l.b16 %v1652
        %v1802 = vunpack.c.l.b16 %v1653
        %v1803 = vpack.c.b16 %v1800, %v1799
        %v1804 = vpack.c.b16 %v1802, %v1801
        %v1806 = vsel %vm964, %v1794, 0
        %v1809 = vsel %vm964, %v1803, 0
        %v1812 = vsel %vm964, %v1804, 0
        %1814 = vmatpush.bf16.xpose.msra.mxu0 0
        %1815 = vmatpush.bf16.xpose.msra.mxu0 0
        %1816 = vmatpush.bf16.xpose.msra.mxu0 0
        %1817 = vmatpush.bf16.xpose.msra.mxu0 0
        %1818 = vmatpush.bf16.xpose.msra.mxu0 0
        %1819 = vmatpush.bf16.xpose.msra.mxu0 0
        %1820 = vmatpush.bf16.xpose.msra.mxu0 %v1812
        %1821 = vmatpush.bf16.xpose.msra.mxu0 %v1809
        %1822 = vmatmul.bf16.gmra.mxu0 %v1806
        %v1823 = vpop.f32.mrf.mxu0
        %v1824 = vadd.f32 0.0, %v1823
        %v1825 = vpop.f32.mrf.mxu0
        %v1826 = vadd.f32 0.0, %v1825
        %1827 = vdwg.mxu0
        %v1830 = vunpack.c.l.b16 %v1600
        %v1831 = vunpack.c.l.b16 %v1601
        %v1832 = vpack.c.b16 %v1831, %v1830
        %v1837 = vunpack.c.l.b16 %v1654
        %v1838 = vunpack.c.l.b16 %v1655
        %v1839 = vunpack.c.l.b16 %v1656
        %v1840 = vunpack.c.l.b16 %v1657
        %v1841 = vpack.c.b16 %v1838, %v1837
        %v1842 = vpack.c.b16 %v1840, %v1839
        %v1844 = vsel %vm964, %v1832, 0
        %v1847 = vsel %vm964, %v1841, 0
        %v1850 = vsel %vm964, %v1842, 0
        %1852 = vmatpush.bf16.xpose.msra.mxu0 0
        %1853 = vmatpush.bf16.xpose.msra.mxu0 0
        %1854 = vmatpush.bf16.xpose.msra.mxu0 0
        %1855 = vmatpush.bf16.xpose.msra.mxu0 0
        %1856 = vmatpush.bf16.xpose.msra.mxu0 0
        %1857 = vmatpush.bf16.xpose.msra.mxu0 0
        %1858 = vmatpush.bf16.xpose.msra.mxu0 %v1850
        %1859 = vmatpush.bf16.xpose.msra.mxu0 %v1847
        %1860 = vmatmul.bf16.gmra.mxu0 %v1844
        %v1861 = vpop.f32.mrf.mxu0
        %v1862 = vadd.f32 0.0, %v1861
        %v1863 = vpop.f32.mrf.mxu0
        %v1864 = vadd.f32 0.0, %v1863
        %1865 = vdwg.mxu0
        %v1866 = vsel %vm1300, %v1748, -inf
        %1867 = vmax.xlane.f32.xlu0 %v1866
        %v1868 = vpop.xlane.xlu0 %1867
        %v1869 = vsel %vm1300, %v1750, -inf
        %1870 = vmax.xlane.f32.xlu0 %v1869
        %v1871 = vpop.xlane.xlu0 %1870
        %v1872 = vsel %vm1300, %v1786, -inf
        %1873 = vmax.xlane.f32.xlu0 %v1872
        %v1874 = vpop.xlane.xlu0 %1873
        %v1875 = vsel %vm1300, %v1788, -inf
        %1876 = vmax.xlane.f32.xlu0 %v1875
        %v1877 = vpop.xlane.xlu0 %1876
        %v1878 = vsel %vm1300, %v1824, -inf
        %1879 = vmax.xlane.f32.xlu0 %v1878
        %v1880 = vpop.xlane.xlu0 %1879
        %v1881 = vsel %vm1300, %v1826, -inf
        %1882 = vmax.xlane.f32.xlu0 %v1881
        %v1883 = vpop.xlane.xlu0 %1882
        %v1884 = vsel %vm1300, %v1862, -inf
        %1885 = vmax.xlane.f32.xlu0 %v1884
        %v1886 = vpop.xlane.xlu0 %1885
        %v1887 = vsel %vm1300, %v1864, -inf
        %1888 = vmax.xlane.f32.xlu0 %v1887
        %v1889 = vpop.xlane.xlu0 %1888
        %v1890 = vsub.f32 %v1748, %v1868
        %v1891 = vsub.f32 %v1750, %v1871
        %v1892 = vsub.f32 %v1786, %v1874
        %v1893 = vsub.f32 %v1788, %v1877
        %v1894 = vsub.f32 %v1824, %v1880
        %v1895 = vsub.f32 %v1826, %v1883
        %v1896 = vsub.f32 %v1862, %v1886
        %v1897 = vsub.f32 %v1864, %v1889
        %v1898 = vmul.f32 %v1890, 1.442695
        %v1899 = vpow.pop %v1898
        %v1900 = vmul.f32 %v1891, 1.442695
        %v1901 = vpow.pop %v1900
        %v1902 = vmul.f32 %v1892, 1.442695
        %v1903 = vpow.pop %v1902
        %v1904 = vmul.f32 %v1893, 1.442695
        %v1905 = vpow.pop %v1904
        %v1906 = vmul.f32 %v1894, 1.442695
        %v1907 = vpow.pop %v1906
        %v1908 = vmul.f32 %v1895, 1.442695
        %v1909 = vpow.pop %v1908
        %v1910 = vmul.f32 %v1896, 1.442695
        %v1911 = vpow.pop %v1910
        %v1912 = vmul.f32 %v1897, 1.442695
        %v1913 = vpow.pop %v1912
        %v1914 = vsel %vm1300, %v1899, 0.0
        %1915 = vadd.xlane.f32.xlu0 %v1914
        %v1916 = vpop.xlane.xlu0 %1915
        %v1917 = vsel %vm1300, %v1901, 0.0
        %1918 = vadd.xlane.f32.xlu0 %v1917
        %v1919 = vpop.xlane.xlu0 %1918
        %v1920 = vsel %vm1300, %v1903, 0.0
        %1921 = vadd.xlane.f32.xlu0 %v1920
        %v1922 = vpop.xlane.xlu0 %1921
        %v1923 = vsel %vm1300, %v1905, 0.0
        %1924 = vadd.xlane.f32.xlu0 %v1923
        %v1925 = vpop.xlane.xlu0 %1924
        %v1926 = vsel %vm1300, %v1907, 0.0
        %1927 = vadd.xlane.f32.xlu0 %v1926
        %v1928 = vpop.xlane.xlu0 %1927
        %v1929 = vsel %vm1300, %v1909, 0.0
        %1930 = vadd.xlane.f32.xlu0 %v1929
        %v1931 = vpop.xlane.xlu0 %1930
        %v1932 = vsel %vm1300, %v1911, 0.0
        %1933 = vadd.xlane.f32.xlu0 %v1932
        %v1934 = vpop.xlane.xlu0 %1933
        %v1935 = vsel %vm1300, %v1913, 0.0
        %1936 = vadd.xlane.f32.xlu0 %v1935
        %v1937 = vpop.xlane.xlu0 %1936
        %v1938 = vrcp.pop %v1916
        %v1939 = vrcp.pop %v1919
        %v1940 = vrcp.pop %v1922
        %v1941 = vrcp.pop %v1925
        %v1942 = vrcp.pop %v1928
        %v1943 = vrcp.pop %v1931
        %v1944 = vrcp.pop %v1934
        %v1945 = vrcp.pop %v1937
        %v1946 = vmul.f32 %v1899, %v1938
        %v1947 = vmul.f32 %v1901, %v1939
        %v1948 = vmul.f32 %v1903, %v1940
        %v1949 = vmul.f32 %v1905, %v1941
        %v1950 = vmul.f32 %v1907, %v1942
        %v1951 = vmul.f32 %v1909, %v1943
        %v1952 = vmul.f32 %v1911, %v1944
        %v1953 = vmul.f32 %v1913, %v1945
        %v1954 = vpack.c.bf16 %v1946, %v1946
        %v1955 = vpack.c.bf16 %v1947, %v1947
        %v1956 = vpack.c.bf16 %v1948, %v1948
        %v1957 = vpack.c.bf16 %v1949, %v1949
        %v1958 = vpack.c.bf16 %v1950, %v1950
        %v1959 = vpack.c.bf16 %v1951, %v1951
        %v1960 = vpack.c.bf16 %v1952, %v1952
        %v1961 = vpack.c.bf16 %v1953, %v1953
        %v1964 = vunpack.c.l.b16 %v1954
        %v1965 = vunpack.c.l.b16 %v1955
        %v1966 = vpack.c.b16 %v1965, %v1964
        %v1971 = vunpack.c.l.b16 %v1698
        %v1972 = vunpack.c.l.b16 %v1699
        %v1973 = vunpack.c.l.b16 %v1700
        %v1974 = vunpack.c.l.b16 %v1701
        %v1975 = vpack.c.b16 %v1972, %v1971
        %v1976 = vpack.c.b16 %v1974, %v1973
        %v1980 = vsel %vm1300, %v1966, 0
        %1982 = vmatpush.bf16.msra.mxu0 0
        %1983 = vmatpush.bf16.msra.mxu0 0
        %1984 = vmatpush.bf16.msra.mxu0 0
        %1985 = vmatpush.bf16.msra.mxu0 0
        %1986 = vmatpush.bf16.msra.mxu0 0
        %1987 = vmatpush.bf16.msra.mxu0 0
        %1988 = vmatpush.bf16.msra.mxu0 %v1976
        %1989 = vmatpush.bf16.msra.mxu0 %v1975
        %1990 = vmatmul.bf16.gmra.mxu0 %v1980
        %v1991 = vpop.f32.mrf.mxu0
        %v1992 = vadd.f32 0.0, %v1991
        %v1993 = vpop.f32.mrf.mxu0
        %v1994 = vadd.f32 0.0, %v1993
        %1995 = vdwg.mxu0
        %v1998 = vunpack.c.l.b16 %v1956
        %v1999 = vunpack.c.l.b16 %v1957
        %v2000 = vpack.c.b16 %v1999, %v1998
        %v2005 = vunpack.c.l.b16 %v1702
        %v2006 = vunpack.c.l.b16 %v1703
        %v2007 = vunpack.c.l.b16 %v1704
        %v2008 = vunpack.c.l.b16 %v1705
        %v2009 = vpack.c.b16 %v2006, %v2005
        %v2010 = vpack.c.b16 %v2008, %v2007
        %v2014 = vsel %vm1300, %v2000, 0
        %2016 = vmatpush.bf16.msra.mxu0 0
        %2017 = vmatpush.bf16.msra.mxu0 0
        %2018 = vmatpush.bf16.msra.mxu0 0
        %2019 = vmatpush.bf16.msra.mxu0 0
        %2020 = vmatpush.bf16.msra.mxu0 0
        %2021 = vmatpush.bf16.msra.mxu0 0
        %2022 = vmatpush.bf16.msra.mxu0 %v2010
        %2023 = vmatpush.bf16.msra.mxu0 %v2009
        %2024 = vmatmul.bf16.gmra.mxu0 %v2014
        %v2025 = vpop.f32.mrf.mxu0
        %v2026 = vadd.f32 0.0, %v2025
        %v2027 = vpop.f32.mrf.mxu0
        %v2028 = vadd.f32 0.0, %v2027
        %2029 = vdwg.mxu0
        %v2032 = vunpack.c.l.b16 %v1958
        %v2033 = vunpack.c.l.b16 %v1959
        %v2034 = vpack.c.b16 %v2033, %v2032
        %v2039 = vunpack.c.l.b16 %v1706
        %v2040 = vunpack.c.l.b16 %v1707
        %v2041 = vunpack.c.l.b16 %v1708
        %v2042 = vunpack.c.l.b16 %v1709
        %v2043 = vpack.c.b16 %v2040, %v2039
        %v2044 = vpack.c.b16 %v2042, %v2041
        %v2048 = vsel %vm1300, %v2034, 0
        %2050 = vmatpush.bf16.msra.mxu0 0
        %2051 = vmatpush.bf16.msra.mxu0 0
        %2052 = vmatpush.bf16.msra.mxu0 0
        %2053 = vmatpush.bf16.msra.mxu0 0
        %2054 = vmatpush.bf16.msra.mxu0 0
        %2055 = vmatpush.bf16.msra.mxu0 0
        %2056 = vmatpush.bf16.msra.mxu0 %v2044
        %2057 = vmatpush.bf16.msra.mxu0 %v2043
        %2058 = vmatmul.bf16.gmra.mxu0 %v2048
        %v2059 = vpop.f32.mrf.mxu0
        %v2060 = vadd.f32 0.0, %v2059
        %v2061 = vpop.f32.mrf.mxu0
        %v2062 = vadd.f32 0.0, %v2061
        %2063 = vdwg.mxu0
        %v2066 = vunpack.c.l.b16 %v1960
        %v2067 = vunpack.c.l.b16 %v1961
        %v2068 = vpack.c.b16 %v2067, %v2066
        %v2073 = vunpack.c.l.b16 %v1710
        %v2074 = vunpack.c.l.b16 %v1711
        %v2075 = vunpack.c.l.b16 %v1712
        %v2076 = vunpack.c.l.b16 %v1713
        %v2077 = vpack.c.b16 %v2074, %v2073
        %v2078 = vpack.c.b16 %v2076, %v2075
        %v2082 = vsel %vm1300, %v2068, 0
        %2084 = vmatpush.bf16.msra.mxu0 0
        %2085 = vmatpush.bf16.msra.mxu0 0
        %2086 = vmatpush.bf16.msra.mxu0 0
        %2087 = vmatpush.bf16.msra.mxu0 0
        %2088 = vmatpush.bf16.msra.mxu0 0
        %2089 = vmatpush.bf16.msra.mxu0 0
        %2090 = vmatpush.bf16.msra.mxu0 %v2078
        %2091 = vmatpush.bf16.msra.mxu0 %v2077
        %2092 = vmatmul.bf16.gmra.mxu0 %v2082
        %v2093 = vpop.f32.mrf.mxu0
        %v2094 = vadd.f32 0.0, %v2093
        %v2095 = vpop.f32.mrf.mxu0
        %v2096 = vadd.f32 0.0, %v2095
        %2097 = vdwg.mxu0
        %2100 = vrot.lane.b32.xlu0 %v2026, 16
        %v2101 = vpop.permute.xlu0 %2100
        %2102 = vrot.lane.b32.xlu0 %v2028, 16
        %v2103 = vpop.permute.xlu0 %2102
        %2108 = vrot.lane.b32.xlu0 %v2060, 32
        %v2109 = vpop.permute.xlu0 %2108
        %2110 = vrot.lane.b32.xlu0 %v2062, 32
        %v2111 = vpop.permute.xlu0 %2110
        %2116 = vrot.lane.b32.xlu0 %v2094, 48
        %v2117 = vpop.permute.xlu0 %2116
        %2118 = vrot.lane.b32.xlu0 %v2096, 48
        %v2119 = vpop.permute.xlu0 %2118
        %v2122 = vsel %vm964, %v1992, %v2101
        %v2123 = vsel %vm964, %v1994, %v2103
        %v2124 = vsel %vm1300, %v2122, %v2109
        %v2125 = vsel %vm1300, %v2123, %v2111
        %v2126 = vsel %vm1303, %v2124, %v2117
        %v2127 = vsel %vm1303, %v2125, %v2119
        %v2128 = vpack.c.bf16 %v2127, %v2126
        %v2129 = vld [vmem:[%s597] sm:$0xf]
        %v2130 = vld [vmem:[%s597 + $0x4] sm:$0xf]
        %v2131 = vld [vmem:[%s597 + $0x8] sm:$0xf]
        %v2132 = vld [vmem:[%s597 + $0xc] sm:$0xf]
        %v2133 = vld [vmem:[%s597 + $0x10] sm:$0xf]
        %v2134 = vld [vmem:[%s597 + $0x14] sm:$0xf]
        %v2135 = vld [vmem:[%s597 + $0x18] sm:$0xf]
        %v2136 = vld [vmem:[%s597 + $0x1c] sm:$0xf]
        %v2137 = vperm.slane %v755, 4
        %v2146 = vunpack.c.l.b16 %v2129
        %v2147 = vunpack.c.l.b16 %v2130
        %v2148 = vunpack.c.l.b16 %v2131
        %v2149 = vunpack.c.l.b16 %v2132
        %v2150 = vunpack.c.l.b16 %v2133
        %v2151 = vunpack.c.l.b16 %v2134
        %v2152 = vunpack.c.l.b16 %v2135
        %v2153 = vunpack.c.l.b16 %v2136
        %v2154 = vpack.c.b16 %v2147, %v2146
        %v2155 = vpack.c.b16 %v2149, %v2148
        %v2156 = vpack.c.b16 %v2151, %v2150
        %v2157 = vpack.c.b16 %v2153, %v2152
        %v2163 = vsel %vm764, %v2128, 0
        %2165 = vmatpush.bf16.msra.mxu0 0
        %2166 = vmatpush.bf16.msra.mxu0 0
        %2167 = vmatpush.bf16.msra.mxu0 0
        %2168 = vmatpush.bf16.msra.mxu0 0
        %2169 = vmatpush.bf16.msra.mxu0 %v2157
        %2170 = vmatpush.bf16.msra.mxu0 %v2156
        %2171 = vmatpush.bf16.msra.mxu0 %v2155
        %2172 = vmatpush.bf16.msra.mxu0 %v2154
        %2173 = vmatmul.bf16.gmra.mxu0 %v2163
        %v2174 = vpop.f32.mrf.mxu0
        %v2175 = vadd.f32 %v2137, %v2174
        %v2176 = vpop.f32.mrf.mxu0
        %v2177 = vadd.f32 %v2137, %v2176
        %2178 = vdwg.mxu0
        %v2179 = vadd.f32 %v1357, %v2175
        %v2180 = vadd.f32 %v1358, %v2177
        %v2181 = vsel %vm764, %v2179, 0.0
        %2182 = vadd.xlane.f32.xlu0 %v2181
        %v2183 = vpop.xlane.xlu0 %2182
        %v2184 = vsel %vm764, %v2180, 0.0
        %2185 = vadd.xlane.f32.xlu0 %v2184
        %v2186 = vpop.xlane.xlu0 %2185
        %v2187 = vmul.f32 %v2183, %v777
        %v2188 = vmul.f32 %v2186, %v777
        %v2189 = vsub.f32 %v2179, %v2187
        %v2190 = vsub.f32 %v2180, %v2188
        %v2191 = vmul.f32 %v2189, %v2189
        %v2192 = vmul.f32 %v2190, %v2190
        %v2193 = vsel %vm764, %v2191, 0.0
        %2194 = vadd.xlane.f32.xlu0 %v2193
        %v2195 = vpop.xlane.xlu0 %2194
        %v2196 = vsel %vm764, %v2192, 0.0
        %2197 = vadd.xlane.f32.xlu0 %v2196
        %v2198 = vpop.xlane.xlu0 %2197
        %v2199 = vmul.f32 %v2195, %v777
        %v2200 = vmul.f32 %v2198, %v777
        %v2201 = vadd.f32 %v2199, 1e-05
        %v2202 = vadd.f32 %v2200, 1e-05
        %v2203 = vrsqrt.pop %v2201
        %v2204 = vmul.f32 %v2203, %v2201
        %v2205 = vmul.f32 %v2204, %v2203
        %v2206 = vmul.f32 0.5, %v2205
        %v2207 = vsub.f32 1.5, %v2206
        %v2208 = vmul.f32 %v2203, %v2207
        %vm2209 = vweird.f32 %v2201
        %vm2210 = vweird.f32 %v2203
        %vm2211 = vmor %vm2209, %vm2210
        %v2212 = vsel %vm2211, %v2203, %v2208
        %v2213 = vrsqrt.pop %v2202
        %v2214 = vmul.f32 %v2213, %v2202
        %v2215 = vmul.f32 %v2214, %v2213
        %v2216 = vmul.f32 0.5, %v2215
        %v2217 = vsub.f32 1.5, %v2216
        %v2218 = vmul.f32 %v2213, %v2217
        %vm2219 = vweird.f32 %v2202
        %vm2220 = vweird.f32 %v2213
        %vm2221 = vmor %vm2219, %vm2220
        %v2222 = vsel %vm2221, %v2213, %v2218
        %v2223 = vmul.f32 %v2189, %v2212
        %v2224 = vmul.f32 %v2190, %v2222
        %v2225 = vpack.c.bf16 %v2224, %v2223
        %v2226 = vld [vmem:[%s739] sm:$0xff]
        %v2227 = vld [vmem:[%s739 + $0x8] sm:$0xff]
        %v2228 = vld [vmem:[%s739 + $0x10] sm:$0xff]
        %v2229 = vld [vmem:[%s739 + $0x18] sm:$0xff]
        %v2230 = vld [vmem:[%s739 + $0x20] sm:$0xff]
        %v2231 = vld [vmem:[%s739 + $0x28] sm:$0xff]
        %v2232 = vld [vmem:[%s739 + $0x30] sm:$0xff]
        %v2233 = vld [vmem:[%s739 + $0x38] sm:$0xff]
        %v2235 = vperm.slane %v757, 0
        %v2236 = vperm.slane %v757, 1
        %v2247 = vunpack.c.l.b16 %v2226
        %v2248 = vunpack.c.h.b16 %v2226
        %v2249 = vunpack.c.l.b16 %v2227
        %v2250 = vunpack.c.h.b16 %v2227
        %v2251 = vunpack.c.l.b16 %v2228
        %v2252 = vunpack.c.h.b16 %v2228
        %v2253 = vunpack.c.l.b16 %v2229
        %v2254 = vunpack.c.h.b16 %v2229
        %v2255 = vunpack.c.l.b16 %v2230
        %v2256 = vunpack.c.h.b16 %v2230
        %v2257 = vunpack.c.l.b16 %v2231
        %v2258 = vunpack.c.h.b16 %v2231
        %v2259 = vunpack.c.l.b16 %v2232
        %v2260 = vunpack.c.h.b16 %v2232
        %v2261 = vunpack.c.l.b16 %v2233
        %v2262 = vunpack.c.h.b16 %v2233
        %v2263 = vpack.c.b16 %v2249, %v2247
        %v2264 = vpack.c.b16 %v2250, %v2248
        %v2265 = vpack.c.b16 %v2253, %v2251
        %v2266 = vpack.c.b16 %v2254, %v2252
        %v2267 = vpack.c.b16 %v2257, %v2255
        %v2268 = vpack.c.b16 %v2258, %v2256
        %v2269 = vpack.c.b16 %v2261, %v2259
        %v2270 = vpack.c.b16 %v2262, %v2260
        %v2280 = vsel %vm764, %v2225, 0
        %2282 = vmatpush.bf16.msra.mxu0 0
        %2283 = vmatpush.bf16.msra.mxu0 0
        %2284 = vmatpush.bf16.msra.mxu0 0
        %2285 = vmatpush.bf16.msra.mxu0 0
        %2286 = vmatpush.bf16.msra.mxu0 %v2269
        %2287 = vmatpush.bf16.msra.mxu0 %v2267
        %2288 = vmatpush.bf16.msra.mxu0 %v2265
        %2289 = vmatpush.bf16.msra.mxu0 %v2263
        %2290 = vmatmul.bf16.gmra.mxu0 %v2280
        %v2291 = vpop.f32.mrf.mxu0
        %v2292 = vadd.f32 %v2235, %v2291
        %v2293 = vpop.f32.mrf.mxu0
        %v2294 = vadd.f32 %v2235, %v2293
        %2295 = vdwg.mxu0
        %2296 = vmatpush.bf16.msra.mxu0 0
        %2297 = vmatpush.bf16.msra.mxu0 0
        %2298 = vmatpush.bf16.msra.mxu0 0
        %2299 = vmatpush.bf16.msra.mxu0 0
        %2300 = vmatpush.bf16.msra.mxu0 %v2270
        %2301 = vmatpush.bf16.msra.mxu0 %v2268
        %2302 = vmatpush.bf16.msra.mxu0 %v2266
        %2303 = vmatpush.bf16.msra.mxu0 %v2264
        %2304 = vmatmul.bf16.gmra.mxu0 %v2280
        %v2305 = vpop.f32.mrf.mxu0
        %v2306 = vadd.f32 %v2236, %v2305
        %v2307 = vpop.f32.mrf.mxu0
        %v2308 = vadd.f32 %v2236, %v2307
        %2309 = vdwg.mxu0
        %v2310 = vmul.f32 %v2292, 0.5
        %v2311 = vmul.f32 %v2306, 0.5
        %v2312 = vmul.f32 %v2294, 0.5
        %v2313 = vmul.f32 %v2308, 0.5
        %v2314 = vmul.f32 %v2292, 0.70710677
        %v2315 = vmul.f32 %v2306, 0.70710677
        %v2316 = vmul.f32 %v2294, 0.70710677
        %v2317 = vmul.f32 %v2308, 0.70710677
        %v2318 = vmul.f32 %v2314, %v2314
        %v2319 = vmin.f32 16.0, %v2318
        %v2320 = vmul.f32 %v2319, 2.1237322e-06
        %v2321 = vadd.f32 %v2320, 0.00028619796
        %v2322 = vmul.f32 %v2319, %v2321
        %v2323 = vadd.f32 %v2322, 0.0036580483
        %v2324 = vmul.f32 %v2319, %v2323
        %v2325 = vadd.f32 %v2324, 0.05243302
        %v2326 = vmul.f32 %v2319, %v2325
        %v2327 = vadd.f32 %v2326, 0.18741608
        %v2328 = vmul.f32 %v2319, %v2327
        %v2329 = vadd.f32 %v2328, 1.1283791
        %v2330 = vmul.f32 %v2314, %v2329
        %v2331 = vmul.f32 %v2319, 3.8918573e-05
        %v2332 = vadd.f32 %v2331, 0.001143296
        %v2333 = vmul.f32 %v2319, %v2332
        %v2334 = vadd.f32 %v2333, 0.014752088
        %v2335 = vmul.f32 %v2319, %v2334
        %v2336 = vadd.f32 %v2335, 0.112945676
        %v2337 = vmul.f32 %v2319, %v2336
        %v2338 = vadd.f32 %v2337, 0.4994258
        %v2339 = vmul.f32 %v2319, %v2338
        %v2340 = vadd.f32 %v2339, 1.0
        %v2341 = vrcp.pop %v2340
        %v2342 = vmul.f32 %v2340, %v2341
        %v2343 = vsub.f32 1.0, %v2342
        %v2344 = vmul.f32 %v2341, %v2343
        %v2345 = vadd.f32 %v2341, %v2344
        %vm2346 = vweird.f32 %v2340
        %vm2347 = vweird.f32 %v2341
        %vm2348 = vmor %vm2346, %vm2347
        %v2349 = vsel %vm2348, %v2341, %v2345
        %v2350 = vand.u32 2147483647, %v2340
        %vm2351 = vcmp.eq.f32.partialorder %v2350, 8.507059e+37
        %v2352 = vand.u32 %v2340, 2147483648
        %v2353 = vor.u32 1.1754944e-38, %v2352
        %v2354 = vsel %vm2351, %v2353, %v2349
        %v2355 = vmul.f32 %v2330, %v2354
        %v2356 = vmin.f32 %v2355, 1.0
        %v2357 = vmax.f32 %v2356, -1.0
        %v2358 = vmul.f32 %v2315, %v2315
        %v2359 = vmin.f32 16.0, %v2358
        %v2360 = vmul.f32 %v2359, 2.1237322e-06
        %v2361 = vadd.f32 %v2360, 0.00028619796
        %v2362 = vmul.f32 %v2359, %v2361
        %v2363 = vadd.f32 %v2362, 0.0036580483
        %v2364 = vmul.f32 %v2359, %v2363
        %v2365 = vadd.f32 %v2364, 0.05243302
        %v2366 = vmul.f32 %v2359, %v2365
        %v2367 = vadd.f32 %v2366, 0.18741608
        %v2368 = vmul.f32 %v2359, %v2367
        %v2369 = vadd.f32 %v2368, 1.1283791
        %v2370 = vmul.f32 %v2315, %v2369
        %v2371 = vmul.f32 %v2359, 3.8918573e-05
        %v2372 = vadd.f32 %v2371, 0.001143296
        %v2373 = vmul.f32 %v2359, %v2372
        %v2374 = vadd.f32 %v2373, 0.014752088
        %v2375 = vmul.f32 %v2359, %v2374
        %v2376 = vadd.f32 %v2375, 0.112945676
        %v2377 = vmul.f32 %v2359, %v2376
        %v2378 = vadd.f32 %v2377, 0.4994258
        %v2379 = vmul.f32 %v2359, %v2378
        %v2380 = vadd.f32 %v2379, 1.0
        %v2381 = vrcp.pop %v2380
        %v2382 = vmul.f32 %v2380, %v2381
        %v2383 = vsub.f32 1.0, %v2382
        %v2384 = vmul.f32 %v2381, %v2383
        %v2385 = vadd.f32 %v2381, %v2384
        %vm2386 = vweird.f32 %v2380
        %vm2387 = vweird.f32 %v2381
        %vm2388 = vmor %vm2386, %vm2387
        %v2389 = vsel %vm2388, %v2381, %v2385
        %v2390 = vand.u32 2147483647, %v2380
        %vm2391 = vcmp.eq.f32.partialorder %v2390, 8.507059e+37
        %v2392 = vand.u32 %v2380, 2147483648
        %v2393 = vor.u32 1.1754944e-38, %v2392
        %v2394 = vsel %vm2391, %v2393, %v2389
        %v2395 = vmul.f32 %v2370, %v2394
        %v2396 = vmin.f32 %v2395, 1.0
        %v2397 = vmax.f32 %v2396, -1.0
        %v2398 = vmul.f32 %v2316, %v2316
        %v2399 = vmin.f32 16.0, %v2398
        %v2400 = vmul.f32 %v2399, 2.1237322e-06
        %v2401 = vadd.f32 %v2400, 0.00028619796
        %v2402 = vmul.f32 %v2399, %v2401
        %v2403 = vadd.f32 %v2402, 0.0036580483
        %v2404 = vmul.f32 %v2399, %v2403
        %v2405 = vadd.f32 %v2404, 0.05243302
        %v2406 = vmul.f32 %v2399, %v2405
        %v2407 = vadd.f32 %v2406, 0.18741608
        %v2408 = vmul.f32 %v2399, %v2407
        %v2409 = vadd.f32 %v2408, 1.1283791
        %v2410 = vmul.f32 %v2316, %v2409
        %v2411 = vmul.f32 %v2399, 3.8918573e-05
        %v2412 = vadd.f32 %v2411, 0.001143296
        %v2413 = vmul.f32 %v2399, %v2412
        %v2414 = vadd.f32 %v2413, 0.014752088
        %v2415 = vmul.f32 %v2399, %v2414
        %v2416 = vadd.f32 %v2415, 0.112945676
        %v2417 = vmul.f32 %v2399, %v2416
        %v2418 = vadd.f32 %v2417, 0.4994258
        %v2419 = vmul.f32 %v2399, %v2418
        %v2420 = vadd.f32 %v2419, 1.0
        %v2421 = vrcp.pop %v2420
        %v2422 = vmul.f32 %v2420, %v2421
        %v2423 = vsub.f32 1.0, %v2422
        %v2424 = vmul.f32 %v2421, %v2423
        %v2425 = vadd.f32 %v2421, %v2424
        %vm2426 = vweird.f32 %v2420
        %vm2427 = vweird.f32 %v2421
        %vm2428 = vmor %vm2426, %vm2427
        %v2429 = vsel %vm2428, %v2421, %v2425
        %v2430 = vand.u32 2147483647, %v2420
        %vm2431 = vcmp.eq.f32.partialorder %v2430, 8.507059e+37
        %v2432 = vand.u32 %v2420, 2147483648
        %v2433 = vor.u32 1.1754944e-38, %v2432
        %v2434 = vsel %vm2431, %v2433, %v2429
        %v2435 = vmul.f32 %v2410, %v2434
        %v2436 = vmin.f32 %v2435, 1.0
        %v2437 = vmax.f32 %v2436, -1.0
        %v2438 = vmul.f32 %v2317, %v2317
        %v2439 = vmin.f32 16.0, %v2438
        %v2440 = vmul.f32 %v2439, 2.1237322e-06
        %v2441 = vadd.f32 %v2440, 0.00028619796
        %v2442 = vmul.f32 %v2439, %v2441
        %v2443 = vadd.f32 %v2442, 0.0036580483
        %v2444 = vmul.f32 %v2439, %v2443
        %v2445 = vadd.f32 %v2444, 0.05243302
        %v2446 = vmul.f32 %v2439, %v2445
        %v2447 = vadd.f32 %v2446, 0.18741608
        %v2448 = vmul.f32 %v2439, %v2447
        %v2449 = vadd.f32 %v2448, 1.1283791
        %v2450 = vmul.f32 %v2317, %v2449
        %v2451 = vmul.f32 %v2439, 3.8918573e-05
        %v2452 = vadd.f32 %v2451, 0.001143296
        %v2453 = vmul.f32 %v2439, %v2452
        %v2454 = vadd.f32 %v2453, 0.014752088
        %v2455 = vmul.f32 %v2439, %v2454
        %v2456 = vadd.f32 %v2455, 0.112945676
        %v2457 = vmul.f32 %v2439, %v2456
        %v2458 = vadd.f32 %v2457, 0.4994258
        %v2459 = vmul.f32 %v2439, %v2458
        %v2460 = vadd.f32 %v2459, 1.0
        %v2461 = vrcp.pop %v2460
        %v2462 = vmul.f32 %v2460, %v2461
        %v2463 = vsub.f32 1.0, %v2462
        %v2464 = vmul.f32 %v2461, %v2463
        %v2465 = vadd.f32 %v2461, %v2464
        %vm2466 = vweird.f32 %v2460
        %vm2467 = vweird.f32 %v2461
        %vm2468 = vmor %vm2466, %vm2467
        %v2469 = vsel %vm2468, %v2461, %v2465
        %v2470 = vand.u32 2147483647, %v2460
        %vm2471 = vcmp.eq.f32.partialorder %v2470, 8.507059e+37
        %v2472 = vand.u32 %v2460, 2147483648
        %v2473 = vor.u32 1.1754944e-38, %v2472
        %v2474 = vsel %vm2471, %v2473, %v2469
        %v2475 = vmul.f32 %v2450, %v2474
        %v2476 = vmin.f32 %v2475, 1.0
        %v2477 = vmax.f32 %v2476, -1.0
        %v2478 = vadd.f32 %v2357, 1.0
        %v2479 = vadd.f32 %v2397, 1.0
        %v2480 = vadd.f32 %v2437, 1.0
        %v2481 = vadd.f32 %v2477, 1.0
        %v2482 = vmul.f32 %v2310, %v2478
        %v2483 = vmul.f32 %v2311, %v2479
        %v2484 = vmul.f32 %v2312, %v2480
        %v2485 = vmul.f32 %v2313, %v2481
        %v2486 = vpack.c.bf16 %v2484, %v2482
        %v2487 = vpack.c.bf16 %v2485, %v2483
        %v2488 = vld [vmem:[%s744] sm:$0xf]
        %v2489 = vld [vmem:[%s744 + $0x4] sm:$0xf]
        %v2490 = vld [vmem:[%s744 + $0x8] sm:$0xf]
        %v2491 = vld [vmem:[%s744 + $0xc] sm:$0xf]
        %v2492 = vld [vmem:[%s744 + $0x10] sm:$0xf]
        %v2493 = vld [vmem:[%s744 + $0x14] sm:$0xf]
        %v2494 = vld [vmem:[%s744 + $0x18] sm:$0xf]
        %v2495 = vld [vmem:[%s744 + $0x1c] sm:$0xf]
        %v2496 = vld [vmem:[%s744 + $0x20] sm:$0xf]
        %v2497 = vld [vmem:[%s744 + $0x24] sm:$0xf]
        %v2498 = vld [vmem:[%s744 + $0x28] sm:$0xf]
        %v2499 = vld [vmem:[%s744 + $0x2c] sm:$0xf]
        %v2500 = vld [vmem:[%s744 + $0x30] sm:$0xf]
        %v2501 = vld [vmem:[%s744 + $0x34] sm:$0xf]
        %v2502 = vld [vmem:[%s744 + $0x38] sm:$0xf]
        %v2503 = vld [vmem:[%s744 + $0x3c] sm:$0xf]
        %v2504 = vld [vmem:[%s744 + $0x40] sm:$0xf]
        %v2505 = vld [vmem:[%s744 + $0x44] sm:$0xf]
        %v2506 = vld [vmem:[%s744 + $0x48] sm:$0xf]
        %v2507 = vld [vmem:[%s744 + $0x4c] sm:$0xf]
        %v2508 = vld [vmem:[%s744 + $0x50] sm:$0xf]
        %v2509 = vld [vmem:[%s744 + $0x54] sm:$0xf]
        %v2510 = vld [vmem:[%s744 + $0x58] sm:$0xf]
        %v2511 = vld [vmem:[%s744 + $0x5c] sm:$0xf]
        %v2512 = vld [vmem:[%s744 + $0x60] sm:$0xf]
        %v2513 = vld [vmem:[%s744 + $0x64] sm:$0xf]
        %v2514 = vld [vmem:[%s744 + $0x68] sm:$0xf]
        %v2515 = vld [vmem:[%s744 + $0x6c] sm:$0xf]
        %v2516 = vld [vmem:[%s744 + $0x70] sm:$0xf]
        %v2517 = vld [vmem:[%s744 + $0x74] sm:$0xf]
        %v2518 = vld [vmem:[%s744 + $0x78] sm:$0xf]
        %v2519 = vld [vmem:[%s744 + $0x7c] sm:$0xf]
        %v2552 = vunpack.c.l.b16 %v2488
        %v2553 = vunpack.c.l.b16 %v2489
        %v2554 = vunpack.c.l.b16 %v2490
        %v2555 = vunpack.c.l.b16 %v2491
        %v2556 = vunpack.c.l.b16 %v2492
        %v2557 = vunpack.c.l.b16 %v2493
        %v2558 = vunpack.c.l.b16 %v2494
        %v2559 = vunpack.c.l.b16 %v2495
        %v2560 = vunpack.c.l.b16 %v2496
        %v2561 = vunpack.c.l.b16 %v2497
        %v2562 = vunpack.c.l.b16 %v2498
        %v2563 = vunpack.c.l.b16 %v2499
        %v2564 = vunpack.c.l.b16 %v2500
        %v2565 = vunpack.c.l.b16 %v2501
        %v2566 = vunpack.c.l.b16 %v2502
        %v2567 = vunpack.c.l.b16 %v2503
        %v2568 = vunpack.c.l.b16 %v2504
        %v2569 = vunpack.c.l.b16 %v2505
        %v2570 = vunpack.c.l.b16 %v2506
        %v2571 = vunpack.c.l.b16 %v2507
        %v2572 = vunpack.c.l.b16 %v2508
        %v2573 = vunpack.c.l.b16 %v2509
        %v2574 = vunpack.c.l.b16 %v2510
        %v2575 = vunpack.c.l.b16 %v2511
        %v2576 = vunpack.c.l.b16 %v2512
        %v2577 = vunpack.c.l.b16 %v2513
        %v2578 = vunpack.c.l.b16 %v2514
        %v2579 = vunpack.c.l.b16 %v2515
        %v2580 = vunpack.c.l.b16 %v2516
        %v2581 = vunpack.c.l.b16 %v2517
        %v2582 = vunpack.c.l.b16 %v2518
        %v2583 = vunpack.c.l.b16 %v2519
        %v2584 = vpack.c.b16 %v2553, %v2552
        %v2585 = vpack.c.b16 %v2555, %v2554
        %v2586 = vpack.c.b16 %v2557, %v2556
        %v2587 = vpack.c.b16 %v2559, %v2558
        %v2588 = vpack.c.b16 %v2561, %v2560
        %v2589 = vpack.c.b16 %v2563, %v2562
        %v2590 = vpack.c.b16 %v2565, %v2564
        %v2591 = vpack.c.b16 %v2567, %v2566
        %v2592 = vpack.c.b16 %v2569, %v2568
        %v2593 = vpack.c.b16 %v2571, %v2570
        %v2594 = vpack.c.b16 %v2573, %v2572
        %v2595 = vpack.c.b16 %v2575, %v2574
        %v2596 = vpack.c.b16 %v2577, %v2576
        %v2597 = vpack.c.b16 %v2579, %v2578
        %v2598 = vpack.c.b16 %v2581, %v2580
        %v2599 = vpack.c.b16 %v2583, %v2582
        %2616 = vmatpush.bf16.msra.mxu0 %v2591
        %2617 = vmatpush.bf16.msra.mxu0 %v2590
        %2618 = vmatpush.bf16.msra.mxu0 %v2589
        %2619 = vmatpush.bf16.msra.mxu0 %v2588
        %2620 = vmatpush.bf16.msra.mxu0 %v2587
        %2621 = vmatpush.bf16.msra.mxu0 %v2586
        %2622 = vmatpush.bf16.msra.mxu0 %v2585
        %2623 = vmatpush.bf16.msra.mxu0 %v2584
        %2624 = vmatmul.bf16.gmra.mxu0 %v2486
        %v2625 = vpop.f32.mrf.mxu0
        %v2626 = vadd.f32 0.0, %v2625
        %v2627 = vpop.f32.mrf.mxu0
        %v2628 = vadd.f32 0.0, %v2627
        %2629 = vdwg.mxu0
        %2630 = vmatpush.bf16.msra.mxu0 %v2599
        %2631 = vmatpush.bf16.msra.mxu0 %v2598
        %2632 = vmatpush.bf16.msra.mxu0 %v2597
        %2633 = vmatpush.bf16.msra.mxu0 %v2596
        %2634 = vmatpush.bf16.msra.mxu0 %v2595
        %2635 = vmatpush.bf16.msra.mxu0 %v2594
        %2636 = vmatpush.bf16.msra.mxu0 %v2593
        %2637 = vmatpush.bf16.msra.mxu0 %v2592
        %2638 = vmatmul.bf16.gmra.mxu0 %v2487
        %v2639 = vpop.f32.mrf.mxu0
        %v2640 = vadd.f32 %v2626, %v2639
        %v2641 = vpop.f32.mrf.mxu0
        %v2642 = vadd.f32 %v2628, %v2641
        %2643 = vdwg.mxu0
        %v2644 = vadd.f32 %v2179, %v2640
        %v2645 = vadd.f32 %v2180, %v2642
        %v2646 = vperm.slane %v755, 5
        %v2647 = vadd.f32 %v2644, %v2646
        %v2648 = vadd.f32 %v2645, %v2646
        %2649 = vst.msk [vmem:[%s697] sm:$0xff] %vm764, %v2647
        %2650 = vst.msk [vmem:[%s697 + $0x8] sm:$0xff] %vm764, %v2648
        %s2651 = sand.u32 %s391, 1
        %s2652 = scalar_lea.sflag [#allocation4], %s2651
        %s2653 = sand.u32 %s391, 1
        %s2654 = smul.addr %s2653, 16
        %s2655 = scalar_lea.vmem [#allocation8], %s2654
        // Predicated region
        $region89: #{transformer_decoder_fused.1} parent=71 // pred_check
          %p2656 = pneg %p401
        $region90: #{transformer_decoder_fused.1} parent=71 // pred_check_branch
          %2658 = sbr.rel (%p2656) target = $region92
        $region91: #{transformer_decoder_fused.1} parent=71 // pred_region
          %2660 = vsyncadd %s2652, 0
          %s2661 = smul.addr %s37, 2
          %s2662 = smul.addr %s2661, 8
          %s2663 = scalar_lea.hbm %s13, %s2662
          %s2664 = sshll.u32 %s2655, 4
          %s2665 = int_to_ptr.vmem [resolvable:$true] %s2664
          %s2666 = sshll.u32 %s2663, 4
          %s2667 = int_to_ptr.hbm [resolvable:$true] %s2666
          %2672 = dma.vmem_to_hbm [thread:$0]  %s2665, 256, %s2667, %s2652, 128, 128, 8
        $region92: #{transformer_decoder_fused.1} parent=71 // pred_fallthru
          _
      $region72: #{transformer_decoder_fused.1} parent=5 // pred_fallthru
        _
      %p2673 = scmp.le.s32.totalorder 2, %s28
      // Predicated region
      $region93: #{transformer_decoder_fused.1} parent=5 // pred_check
        %p2674 = pneg %p2673
      $region94: #{transformer_decoder_fused.1} parent=5 // pred_check_branch
        %2676 = sbr.rel (%p2674) target = $region96
      $region95: #{transformer_decoder_fused.1} parent=5 // pred_region
        %s2677 = ssub.s32 %s28, 2
        // Predicated region
        $region97: #{transformer_decoder_fused.1} parent=95 // pred_check
          %p2678 = pneg %p407
        $region98: #{transformer_decoder_fused.1} parent=95 // pred_check_branch
          %2680 = sbr.rel (%p2678) target = $region100
        $region99: #{transformer_decoder_fused.1} parent=95 // pred_region
          %s2681 = sand.u32 %s392, 1
          %s2682 = scalar_lea.sflag [#allocation4], %s2681
          %s2683 = sand.u32 %s392, 1
          %s2684 = smul.addr %s2683, 16
          %s2685 = scalar_lea.vmem [#allocation8], %s2684
          %2687 = dma.done %s2682, 256
        $region100: #{transformer_decoder_fused.1} parent=95 // pred_fallthru
          _
      $region96: #{transformer_decoder_fused.1} parent=5 // pred_fallthru
        _
    $region6: #{transformer_decoder_fused.1} parent=1 // loop_footer
      %s32 = sadd.s32 1, %s28
    $region7: #{transformer_decoder_fused.1} parent=1 // loop_footer_branch
      %27 = sbr.rel target = $region3
    $region8: #{transformer_decoder_fused.1} parent=1 // loop_exit
      _
    %2688 = vsyncpa [#allocation3], 1
    %s2689 = scalar_lea.sflag [#allocation3], 1
    %2690 = vsyncpa %s2689, 1
    %2691 = vsyncpa [#allocation6], 1
    %s2692 = scalar_lea.sflag [#allocation6], 1
    %2693 = vsyncpa %s2692, 1
    %2694 = vsyncpa [#allocation4], 1
    %s2695 = scalar_lea.sflag [#allocation4], 1
    %2696 = vsyncpa %s2695, 1

</llo_original>
